<compile_context>
chip_gen: v6e
topology: v6e:2x2x1
jax: 0.10.0
libtpu: 0.0.40
codegen_flags: <defaults>
</compile_context>

<pallas_src>
import functools

import jax
import jax.numpy as jnp
from jax.experimental import pallas as pl
from jax.experimental.pallas import tpu as pltpu

EPS = 1e-5
LANE = 128                          # lane width / channel padding target
VMEM_LIMIT = 32 * 1024 * 1024       # safe on v5e/v6e/v7x; tiles are far smaller


def _round_up(a, b):
    return (a + b - 1) // b * b


def _pick_row_tile(ho, requested=None, cap=32):
    """Largest divisor of the output height <= cap (or the requested tile)."""
    if requested is not None:
        assert ho % requested == 0, (ho, requested)
        return requested
    r = 1
    for d in range(1, min(ho, cap) + 1):
        if ho % d == 0:
            r = d
    return r


# ----------------------------- Pallas kernels ------------------------------

def _dw_s2_kernel(x_ref, h_ref, w_ref, y_ref, st_ref, *, R, Wo, Cp):
    """Depthwise 3x3, stride 2, padding 1, on a phase-folded padded input.

    x_ref : [1, R, 2, Wh, 2*Cp]  rows i*R .. i*R+R-1 of the folded view
                                 (dim 2 = row parity, lanes [q*Cp:(q+1)*Cp] =
                                  column parity q)
    h_ref : [1, 1, 2, Wh, 2*Cp]  halo row i*R+R (needed by the kh=2 taps)
    w_ref : [9, Cp]              tap k = kh*3 + kw, f32
    y_ref : [1, R, Wo, Cp]       bf16 output tile
    st_ref: [1, 1, 8, Cp]        row 0 = sum, row 1 = sum of squares (f32)
    """
    w = w_ref[...]
    acc = jnp.zeros((R, Wo, Cp), jnp.float32)
    # tap index (0,1,2) -> (parity, +1 slab shift): 0->(0,0) 1->(1,0) 2->(0,1)
    tap = ((0, 0), (1, 0), (0, 1))
    for kh in range(3):
        p, dh = tap[kh]
        for kw in range(3):
            q, dw = tap[kw]
            lo, hi = q * Cp, (q + 1) * Cp
            if dh == 0:
                xs = x_ref[0, :, p, dw:dw + Wo, lo:hi]            # [R, Wo, Cp]
            else:
                parts = []
                if R > 1:
                    parts.append(x_ref[0, 1:R, p, dw:dw + Wo, lo:hi])
                parts.append(h_ref[0, :, p, dw:dw + Wo, lo:hi])
                xs = parts[0] if len(parts) == 1 else jnp.concatenate(
                    parts, axis=0)                                 # [R, Wo, Cp]
            k = kh * 3 + kw
            acc = acc + xs.astype(jnp.float32) * w[k:k + 1, :]     # f32 VPU MAC
    y_ref[0] = acc.astype(y_ref.dtype)                             # bf16 store
    # BN partials from the f32 accumulator (before the bf16 downcast).
    s = jnp.sum(jnp.sum(acc, axis=0), axis=0, keepdims=True)            # [1,C]
    ss = jnp.sum(jnp.sum(acc * acc, axis=0), axis=0, keepdims=True)     # [1,C]
    st_ref[0, 0] = jnp.concatenate(
        [s, ss, jnp.zeros((6, Cp), jnp.float32)], axis=0)


def _pw_kernel(*refs, pre_affine, tm, m_actual, nt, cp):
    """[optional folded-BN affine] -> 1x1 conv as bf16 MXU matmul (f32 acc)
    -> bf16 result + per-tile (sum, sumsq) BN partials from the f32 values.

    refs (pre_affine=True) : x[TM,C] bf16, w[C,C] bf16, scale[1,C], shift[1,C],
                             y[TM,C] bf16, st[1,8,C] f32
    refs (pre_affine=False): x, w, y, st
    """
    if pre_affine:
        x_ref, w_ref, s_ref, b_ref, y_ref, st_ref = refs
    else:
        x_ref, w_ref, y_ref, st_ref = refs

    xf = x_ref[...].astype(jnp.float32)
    if pre_affine:
        xf = xf * s_ref[...] + b_ref[...]            # BN math stays f32 (v5e)
    y = jnp.dot(xf.astype(jnp.bfloat16), w_ref[...],
                preferred_element_type=jnp.float32)  # MXU, bf16 operands
    y_ref[...] = y.astype(y_ref.dtype)

    def stats(yv):
        s = jnp.sum(yv, axis=0, keepdims=True)
        ss = jnp.sum(yv * yv, axis=0, keepdims=True)
        return jnp.concatenate([s, ss, jnp.zeros((6, cp), jnp.float32)], axis=0)

    st_ref[0] = stats(y)                             # unmasked (common case)
    if m_actual % tm != 0:
        # Only the last tile contains zero-padded rows; redo its stats masked.
        @pl.when(pl.program_id(0) == nt - 1)
        def _():
            row = (nt - 1) * tm + jax.lax.broadcasted_iota(
                jnp.int32, (tm, 1), 0)
            st_ref[0] = stats(jnp.where(row < m_actual, y, 0.0))


# ------------------------------- wrappers -----------------------------------

def dw_stride2(xp, w9c, *, row_tile=None):
    """Depthwise 3x3 / stride 2 on an already zero-padded bf16 NHWC tensor.

    xp : [N, H+2, W+2, Cp] bf16 (spatial pad 1, channels lane-padded)
    Returns (y [N, Ho, Wo, Cp] bf16, stats [N, nt, 8, Cp] f32).
    """
    N, Hp, Wp, Cp = xp.shape
    Hh, Wh = Hp // 2, Wp // 2
    Ho, Wo = Hh - 1, Wh - 1
    R = _pick_row_tile(Ho, row_tile)
    nt = Ho // R
    # Free row-major view: [N, Hh, 2, Wh, 2*Cp] (row parity dim, column parity
    # folded into the lane dim).  No phase-split tensor is materialized.
    x6 = xp.reshape(N, Hh, 2, Wh, 2 * Cp)

    kernel = functools.partial(_dw_s2_kernel, R=R, Wo=Wo, Cp=Cp)
    return pl.pallas_call(
        kernel,
        grid=(N, nt),
        out_shape=(jax.ShapeDtypeStruct((N, Ho, Wo, Cp), jnp.bfloat16),
                   jax.ShapeDtypeStruct((N, nt, 8, Cp), jnp.float32)),
        in_specs=[
            pl.BlockSpec((1, R, 2, Wh, 2 * Cp),
                         lambda n, i: (n, i, 0, 0, 0)),
            # 1-row halo: block size 1 along the folded-row axis, so the block
            # index is an element index (row i*R + R).
            pl.BlockSpec((1, 1, 2, Wh, 2 * Cp),
                         lambda n, i: (n, i * R + R, 0, 0, 0)),
            pl.BlockSpec((9, Cp), lambda n, i: (0, 0)),
        ],
        out_specs=(pl.BlockSpec((1, R, Wo, Cp), lambda n, i: (n, i, 0, 0)),
                   pl.BlockSpec((1, 1, 8, Cp), lambda n, i: (n, i, 0, 0))),
        compiler_params=pltpu.CompilerParams(
            dimension_semantics=("parallel", "parallel"),
            vmem_limit_bytes=VMEM_LIMIT),
    )(x6, x6, w9c)


def pointwise(x2d, w_bf16, scale=None, shift=None):
    """1x1 conv (+ optional folded pre-BN affine) over an [M, C] bf16 slab.
    Returns (y [M_pad, C] bf16, stats [n_tiles, 8, C] f32)."""
    M, Cp = x2d.shape
    TM = min(2048, _round_up(max(M, 8), 8))
    M_pad = _round_up(M, TM)
    if M_pad != M:
        x2d = jnp.pad(x2d, ((0, M_pad - M), (0, 0)))
    nt = M_pad // TM
    pre = scale is not None

    kernel = functools.partial(_pw_kernel, pre_affine=pre, tm=TM,
                               m_actual=M, nt=nt, cp=Cp)
    in_specs = [pl.BlockSpec((TM, Cp), lambda i: (i, 0)),
                pl.BlockSpec((Cp, Cp), lambda i: (0, 0))]
    args = [x2d, w_bf16]
    if pre:
        in_specs += [pl.BlockSpec((1, Cp), lambda i: (0, 0)),
                     pl.BlockSpec((1, Cp), lambda i: (0, 0))]
        args += [scale, shift]

    return pl.pallas_call(
        kernel,
        grid=(nt,),
        out_shape=(jax.ShapeDtypeStruct((M_pad, Cp), jnp.bfloat16),
                   jax.ShapeDtypeStruct((nt, 8, Cp), jnp.float32)),
        in_specs=in_specs,
        out_specs=(pl.BlockSpec((TM, Cp), lambda i: (i, 0)),
                   pl.BlockSpec((1, 8, Cp), lambda i: (i, 0, 0))),
        compiler_params=pltpu.CompilerParams(
            dimension_semantics=("parallel",),
            vmem_limit_bytes=VMEM_LIMIT),
    )(*args)


def _bn_scale_shift(stats, count, gamma_p, beta_p):
    """Fold train-mode BatchNorm into per-channel (scale, shift) from the
    single-pass (sum, sumsq) partials (f32).  Padded lanes -> (0, 0)."""
    st = stats.reshape(-1, stats.shape[-2], stats.shape[-1])
    s = jnp.sum(st[:, 0, :], axis=0)
    ss = jnp.sum(st[:, 1, :], axis=0)
    mean = s / count
    var = jnp.maximum(ss / count - mean * mean, 0.0)
    scale = gamma_p * jax.lax.rsqrt(var + EPS)
    shift = beta_p - mean * scale
    return scale.reshape(1, -1), shift.reshape(1, -1)


def _prepare_params(p, cp):
    """Zero-pad channel dims to the lane width; pointwise weights -> bf16."""
    def pad_last(a):
        return jnp.pad(a, [(0, 0)] * (a.ndim - 1) + [(0, cp - a.shape[-1])])

    def pad_pw(w):
        wp = jnp.zeros((cp, cp), jnp.float32)
        wp = wp.at[:w.shape[0], :w.shape[1]].set(w)
        return wp.astype(jnp.bfloat16)

    q = {"w1": pad_last(p["w1"]), "w4": pad_last(p["w4"]),
         "w2": pad_pw(p["w2"]), "w3": pad_pw(p["w3"]), "w5": pad_pw(p["w5"])}
    for k in ("g1", "b1", "g2", "b2", "g3", "b3", "g4", "b4", "g5", "b5"):
        q[k] = pad_last(p[k].reshape(-1))
    return q


def down_block_forward(x_nchw, p, *, dw_row_tile=None):
    """Pallas implementation of DownBlock.forward (input/output NCHW)."""
    N, Cin, H, W = x_nchw.shape
    mid = p["w2"].shape[1]
    Cp = _round_up(max(Cin, mid), LANE)
    Ho, Wo = H // 2, W // 2
    M_full, M_half = N * H * W, N * Ho * Wo
    q = _prepare_params(p, Cp)

    # NCHW -> NHWC, bf16 cast, lane pad (one fused XLA layout pass).
    x = jnp.transpose(x_nchw, (0, 2, 3, 1)).astype(jnp.bfloat16)
    x = jnp.pad(x, ((0, 0), (0, 0), (0, 0), (0, Cp - Cin)))
    # Spatially padded copy for the branch-1 depthwise conv (fuses with above).
    xp1 = jnp.pad(x, ((0, 0), (1, 1), (1, 1), (0, 0)))

    # ---- branch 1: dw3x3(s2) -> bn1 -> 1x1 -> bn2 -> relu
    t, st1 = dw_stride2(xp1, q["w1"], row_tile=dw_row_tile)
    sc1, sh1 = _bn_scale_shift(st1, M_half, q["g1"], q["b1"])
    y1, st2 = pointwise(t.reshape(M_half, Cp), q["w2"], sc1, sh1)
    sc2, sh2 = _bn_scale_shift(st2, M_half, q["g2"], q["b2"])

    # ---- branch 2: 1x1 -> bn3 -> relu -> dw3x3(s2) -> bn4 -> 1x1 -> bn5 -> relu
    u, st3 = pointwise(x.reshape(M_full, Cp), q["w3"])
    sc3, sh3 = _bn_scale_shift(st3, M_full, q["g3"], q["b3"])
    # bn3-affine + ReLU + zero-pad: one fused XLA pass (bf16 read + bf16 write)
    # producing the padded tensor the depthwise kernel reads directly.  The
    # phase fold inside dw_stride2 is a free reshape view (no extra HBM pass).
    ua = jnp.maximum(u[:M_full].astype(jnp.float32) * sc3 + sh3, 0.0)
    up = jnp.pad(ua.astype(jnp.bfloat16).reshape(N, H, W, Cp),
                 ((0, 0), (1, 1), (1, 1), (0, 0)))
    v, st4 = dw_stride2(up, q["w4"], row_tile=dw_row_tile)
    sc4, sh4 = _bn_scale_shift(st4, M_half, q["g4"], q["b4"])
    y2, st5 = pointwise(v.reshape(M_half, Cp), q["w5"], sc4, sh4)
    sc5, sh5 = _bn_scale_shift(st5, M_half, q["g5"], q["b5"])

    # ---- bn2/bn5 apply + relu + concat + channel shuffle (g=2) + NHWC->NCHW.
    # Left to XLA: it fuses into the single unavoidable output-layout transpose.
    o1 = jnp.maximum(y1[:M_half].astype(jnp.float32) * sc2 + sh2, 0.0)[:, :mid]
    o2 = jnp.maximum(y2[:M_half].astype(jnp.float32) * sc5 + sh5, 0.0)[:, :mid]
    out = jnp.stack([o1, o2], axis=-1).reshape(N, Ho, Wo, 2 * mid)  # interleave
    return jnp.transpose(out, (0, 3, 1, 2)).astype(x_nchw.dtype)    # NCHW


# -------------------------- pure-JAX reference -------------------------------

def _bn_train(x, g, b):
    m = jnp.mean(x, axis=(0, 2, 3), keepdims=True)
    v = jnp.mean((x - m) ** 2, axis=(0, 2, 3), keepdims=True)
    return (x - m) * jax.lax.rsqrt(v + EPS) * g.reshape(1, -1, 1, 1) \
        + b.reshape(1, -1, 1, 1)


def _dw_ref(x, w9c, stride):
    C = x.shape[1]
    w = w9c.reshape(3, 3, C).transpose(2, 0, 1)[:, None]          # [C,1,3,3]
    return jax.lax.conv_general_dilated(
        x, w, (stride, stride), ((1, 1), (1, 1)),
        dimension_numbers=("NCHW", "OIHW", "NCHW"), feature_group_count=C)


def _pw_ref(x, w):
    return jax.lax.conv_general_dilated(
        x, w.T[:, :, None, None], (1, 1), "VALID",
        dimension_numbers=("NCHW", "OIHW", "NCHW"))


def reference_forward(x, p):
    o1 = _bn_train(_dw_ref(x, p["w1"], 2), p["g1"], p["b1"])
    o1 = jax.nn.relu(_bn_train(_pw_ref(o1, p["w2"]), p["g2"], p["b2"]))
    o2 = jax.nn.relu(_bn_train(_pw_ref(x, p["w3"]), p["g3"], p["b3"]))
    o2 = _bn_train(_dw_ref(o2, p["w4"], 2), p["g4"], p["b4"])
    o2 = jax.nn.relu(_bn_train(_pw_ref(o2, p["w5"]), p["g5"], p["b5"]))
    out = jnp.concatenate([o1, o2], axis=1)
    N, C, H, W = out.shape
    return (out.reshape(N, 2, C // 2, H, W)
               .transpose(0, 2, 1, 3, 4)
               .reshape(N, C, H, W))


# ------------------------------ parameters -----------------------------------

def init_params(key, in_channels, out_channels):
    mid = out_channels // 2
    ks = jax.random.split(key, 10)

    def bn(k, c):
        k1, k2 = jax.random.split(k)
        return (1.0 + 0.1 * jax.random.normal(k1, (1, c), jnp.float32),
                0.1 * jax.random.normal(k2, (1, c), jnp.float32))

    p = {}
    # depthwise weights stored as [9, C] with k = kh*3 + kw
    p["w1"] = 0.1 * jax.random.normal(ks[0], (3, 3, in_channels),
                                      jnp.float32).reshape(9, in_channels)
    p["w4"] = 0.1 * jax.random.normal(ks[1], (3, 3, mid),
                                      jnp.float32).reshape(9, mid)
    # pointwise weights stored as [Cin, Cout]
    p["w2"] = 0.1 * jax.random.normal(ks[2], (in_channels, mid), jnp.float32)
    p["w3"] = 0.1 * jax.random.normal(ks[3], (in_channels, mid), jnp.float32)
    p["w5"] = 0.1 * jax.random.normal(ks[4], (mid, mid), jnp.float32)
    p["g1"], p["b1"] = bn(ks[5], in_channels)
    p["g2"], p["b2"] = bn(ks[6], mid)
    p["g3"], p["b3"] = bn(ks[7], mid)
    p["g4"], p["b4"] = bn(ks[8], mid)
    p["g5"], p["b5"] = bn(ks[9], mid)
    return p


# --------------------------------- main --------------------------------------

if __name__ == "__main__":
    key = jax.random.PRNGKey(0)
    kx, kp = jax.random.split(key)

    N, Cin, H, W = 2, 4, 16, 16
    out_channels = 8
    x = jax.random.normal(kx, (N, Cin, H, W), jnp.float32)
    params = init_params(kp, Cin, out_channels)

    # Use a 4-row depthwise tile so the (batch, row-tile) grid and the halo
    # BlockSpec path are exercised even at this small test resolution.
    fwd = jax.jit(functools.partial(down_block_forward, dw_row_tile=4))
    out = jax.block_until_ready(fwd(x, params))
    ref = jax.block_until_ready(reference_forward(x, params))

    assert out.shape == (N, out_channels, H // 2, W // 2), out.shape
    # Activations are stored in bf16 end-to-end (per the perf review) and the
    # 1x1 convs use bf16 MXU operands, so compare against the f32 reference
    # with a bf16-appropriate tolerance (BN renormalization after every conv
    # keeps the error bounded).
    diff = jnp.abs(out - ref)
    max_d = float(jnp.max(diff))
    mean_d = float(jnp.mean(diff))
    if not (max_d < 1e-1 and mean_d < 2e-2):
        raise RuntimeError(
            f"mismatch vs reference: max abs diff = {max_d}, mean = {mean_d}")
    print("KERNEL_OK")
</pallas_src>

<mosaic_0001>
module attributes {stable_mosaic.version = 11 : i64} {
  func.func @_pw_kernel(%arg0: i32, %arg1: memref<512x128xbf16, #tpu.memory_space<vmem>>, %arg2: memref<128x128xbf16, #tpu.memory_space<vmem>>, %arg3: memref<512x128xbf16, #tpu.memory_space<vmem>>, %arg4: memref<1x8x128xf32, #tpu.memory_space<vmem>>) attributes {dimension_semantics = [#tpu.dimension_semantics<parallel>], iteration_bounds = array<i64: 1>, scalar_prefetch = 0 : i64, scratch_operands = 0 : i64, tpu.core_type = #tpu.core_type<tc>, window_params = [{transform_indices = @transform_0, window_bounds = array<i64: 512, 128>}, {pipeline_mode = #tpu.pipeline_mode<synchronous>, transform_indices = @transform_1, window_bounds = array<i64: 128, 128>}, {transform_indices = @transform_2, window_bounds = array<i64: 512, 128>}, {transform_indices = @transform_3, window_bounds = array<i64: 1, 8, 128>}]} {
    %c0 = arith.constant 0 : index
    %c0_0 = arith.constant 0 : index
    %0 = vector.load %arg1[%c0, %c0_0] : memref<512x128xbf16, #tpu.memory_space<vmem>>, vector<512x128xbf16>
    %1 = arith.extf %0 : vector<512x128xbf16> to vector<512x128xf32>
    %2 = arith.truncf %1 : vector<512x128xf32> to vector<512x128xbf16>
    %c0_1 = arith.constant 0 : index
    %c0_2 = arith.constant 0 : index
    %3 = vector.load %arg2[%c0_1, %c0_2] : memref<128x128xbf16, #tpu.memory_space<vmem>>, vector<128x128xbf16>
    %cst = arith.constant dense<0.000000e+00> : vector<512x128xf32>
    %4 = tpu.matmul %2, %3, %cst {dimension_numbers = #tpu.dot_dimension_numbers<[1], [0], [0], [1], [0, 0, 1, 1], [], []>} : vector<512x128xbf16>, vector<128x128xbf16>, vector<512x128xf32> -> vector<512x128xf32>
    %5 = arith.truncf %4 : vector<512x128xf32> to vector<512x128xbf16>
    %c0_3 = arith.constant 0 : index
    %c0_4 = arith.constant 0 : index
    %6 = vector.load %arg3[%c0_3, %c0_4] : memref<512x128xbf16, #tpu.memory_space<vmem>>, vector<512x128xbf16>
    tpu.vector_store %arg3[%c0_3, %c0_4], %5 {strides = array<i32>} : memref<512x128xbf16, #tpu.memory_space<vmem>>, vector<512x128xbf16>,
    %cst_5 = arith.constant dense<0.000000e+00> : vector<128xf32>
    %7 = vector.multi_reduction <add>, %4, %cst_5 [0] : vector<512x128xf32> to vector<128xf32>
    %8 = vector.shape_cast %7 : vector<128xf32> to vector<1x128xf32>
    %9 = arith.mulf %4, %4 : vector<512x128xf32>
    %cst_6 = arith.constant dense<0.000000e+00> : vector<128xf32>
    %10 = vector.multi_reduction <add>, %9, %cst_6 [0] : vector<512x128xf32> to vector<128xf32>
    %11 = vector.shape_cast %10 : vector<128xf32> to vector<1x128xf32>
    %cst_7 = arith.constant 0.000000e+00 : f32
    %12 = vector.broadcast %cst_7 : f32 to vector<6x128xf32>
    %13 = tpu.concatenate %8, %11, %12 in 0 : vector<1x128xf32>, vector<1x128xf32>, vector<6x128xf32> -> vector<8x128xf32>
    %c0_8 = arith.constant 0 : index
    %c0_9 = arith.constant 0 : index
    %c0_10 = arith.constant 0 : index
    %14 = vector.load %arg4[%c0_8, %c0_9, %c0_10] : memref<1x8x128xf32, #tpu.memory_space<vmem>>, vector<1x8x128xf32>
    %15 = vector.shape_cast %14 : vector<1x8x128xf32> to vector<8x128xf32>
    %16 = vector.shape_cast %13 : vector<8x128xf32> to vector<1x8x128xf32>
    tpu.vector_store %arg4[%c0_8, %c0_9, %c0_10], %16 {strides = array<i32>} : memref<1x8x128xf32, #tpu.memory_space<vmem>>, vector<1x8x128xf32>,
    return
  }
  func.func @transform_0(%arg0: i32) -> (i32, i32) {
    %c0_i32 = arith.constant 0 : i32
    %c0_i32_0 = arith.constant 0 : i32
    return %arg0, %c0_i32 : i32, i32
  }
  func.func @transform_1(%arg0: i32) -> (i32, i32) {
    %c0_i32 = arith.constant 0 : i32
    %c0_i32_0 = arith.constant 0 : i32
    %c0_i32_1 = arith.constant 0 : i32
    return %c0_i32, %c0_i32_0 : i32, i32
  }
  func.func @transform_2(%arg0: i32) -> (i32, i32) {
    %c0_i32 = arith.constant 0 : i32
    %c0_i32_0 = arith.constant 0 : i32
    return %arg0, %c0_i32 : i32, i32
  }
  func.func @transform_3(%arg0: i32) -> (i32, i32, i32) {
    %c0_i32 = arith.constant 0 : i32
    %c0_i32_0 = arith.constant 0 : i32
    %c0_i32_1 = arith.constant 0 : i32
    return %arg0, %c0_i32, %c0_i32_0 : i32, i32, i32
  }
}

module attributes {stable_mosaic.version = 11 : i64} {
  func.func @_dw_s2_kernel(%arg0: i32, %arg1: i32, %arg2: memref<1x4x2x9x256xbf16, #tpu.memory_space<vmem>>, %arg3: memref<1x1x2x9x256xbf16, #tpu.memory_space<vmem>>, %arg4: memref<9x128xf32, #tpu.memory_space<vmem>>, %arg5: memref<1x4x8x128xbf16, #tpu.memory_space<vmem>>, %arg6: memref<1x1x8x128xf32, #tpu.memory_space<vmem>>) attributes {dimension_semantics = [#tpu.dimension_semantics<parallel>, #tpu.dimension_semantics<parallel>], iteration_bounds = array<i64: 2, 2>, scalar_prefetch = 0 : i64, scratch_operands = 0 : i64, tpu.core_type = #tpu.core_type<tc>, window_params = [{transform_indices = @transform_0, window_bounds = array<i64: 1, 4, 2, 9, 256>}, {transform_indices = @transform_1, window_bounds = array<i64: 1, 1, 2, 9, 256>}, {pipeline_mode = #tpu.pipeline_mode<synchronous>, transform_indices = @transform_2, window_bounds = array<i64: 9, 128>}, {transform_indices = @transform_3, window_bounds = array<i64: 1, 4, 8, 128>}, {transform_indices = @transform_4, window_bounds = array<i64: 1, 1, 8, 128>}]} {
    %c0 = arith.constant 0 : index
    %c0_0 = arith.constant 0 : index
    %0 = vector.load %arg4[%c0, %c0_0] : memref<9x128xf32, #tpu.memory_space<vmem>>, vector<9x128xf32>
    %cst = arith.constant 0.000000e+00 : f32
    %1 = vector.broadcast %cst : f32 to vector<4x8x128xf32>
    %c0_1 = arith.constant 0 : index
    %c0_2 = arith.constant 0 : index
    %c0_3 = arith.constant 0 : index
    %c0_4 = arith.constant 0 : index
    %c0_5 = arith.constant 0 : index
    %2 = vector.load %arg2[%c0_1, %c0_2, %c0_3, %c0_4, %c0_5] : memref<1x4x2x9x256xbf16, #tpu.memory_space<vmem>>, vector<1x4x1x8x128xbf16>
    %3 = vector.shape_cast %2 : vector<1x4x1x8x128xbf16> to vector<4x8x128xbf16>
    %4 = arith.extf %3 : vector<4x8x128xbf16> to vector<4x8x128xf32>
    %5 = vector.extract_strided_slice %0 {offsets = [0, 0], sizes = [1, 128], strides = [1, 1]} : vector<9x128xf32> to vector<1x128xf32>
    %6 = vector.shape_cast %5 : vector<1x128xf32> to vector<1x1x128xf32>
    %7 = vector.broadcast %6 : vector<1x1x128xf32> to vector<4x8x128xf32>
    %8 = arith.mulf %4, %7 : vector<4x8x128xf32>
    %9 = arith.addf %1, %8 : vector<4x8x128xf32>
    %c0_6 = arith.constant 0 : index
    %c0_7 = arith.constant 0 : index
    %c0_8 = arith.constant 0 : index
    %c0_9 = arith.constant 0 : index
    %c128 = arith.constant 128 : index
    %10 = vector.load %arg2[%c0_6, %c0_7, %c0_8, %c0_9, %c128] : memref<1x4x2x9x256xbf16, #tpu.memory_space<vmem>>, vector<1x4x1x8x128xbf16>
    %11 = vector.shape_cast %10 : vector<1x4x1x8x128xbf16> to vector<4x8x128xbf16>
    %12 = arith.extf %11 : vector<4x8x128xbf16> to vector<4x8x128xf32>
    %13 = vector.extract_strided_slice %0 {offsets = [1, 0], sizes = [1, 128], strides = [1, 1]} : vector<9x128xf32> to vector<1x128xf32>
    %14 = vector.shape_cast %13 : vector<1x128xf32> to vector<1x1x128xf32>
    %15 = vector.broadcast %14 : vector<1x1x128xf32> to vector<4x8x128xf32>
    %16 = arith.mulf %12, %15 : vector<4x8x128xf32>
    %17 = arith.addf %9, %16 : vector<4x8x128xf32>
    %c0_10 = arith.constant 0 : index
    %c0_11 = arith.constant 0 : index
    %c0_12 = arith.constant 0 : index
    %c1 = arith.constant 1 : index
    %c0_13 = arith.constant 0 : index
    %18 = vector.load %arg2[%c0_10, %c0_11, %c0_12, %c1, %c0_13] : memref<1x4x2x9x256xbf16, #tpu.memory_space<vmem>>, vector<1x4x1x8x128xbf16>
    %19 = vector.shape_cast %18 : vector<1x4x1x8x128xbf16> to vector<4x8x128xbf16>
    %20 = arith.extf %19 : vector<4x8x128xbf16> to vector<4x8x128xf32>
    %21 = vector.extract_strided_slice %0 {offsets = [2, 0], sizes = [1, 128], strides = [1, 1]} : vector<9x128xf32> to vector<1x128xf32>
    %22 = vector.shape_cast %21 : vector<1x128xf32> to vector<1x1x128xf32>
    %23 = vector.broadcast %22 : vector<1x1x128xf32> to vector<4x8x128xf32>
    %24 = arith.mulf %20, %23 : vector<4x8x128xf32>
    %25 = arith.addf %17, %24 : vector<4x8x128xf32>
    %c0_14 = arith.constant 0 : index
    %c0_15 = arith.constant 0 : index
    %c1_16 = arith.constant 1 : index
    %c0_17 = arith.constant 0 : index
    %c0_18 = arith.constant 0 : index
    %26 = vector.load %arg2[%c0_14, %c0_15, %c1_16, %c0_17, %c0_18] : memref<1x4x2x9x256xbf16, #tpu.memory_space<vmem>>, vector<1x4x1x8x128xbf16>
    %27 = vector.shape_cast %26 : vector<1x4x1x8x128xbf16> to vector<4x8x128xbf16>
    %28 = arith.extf %27 : vector<4x8x128xbf16> to vector<4x8x128xf32>
    %29 = vector.extract_strided_slice %0 {offsets = [3, 0], sizes = [1, 128], strides = [1, 1]} : vector<9x128xf32> to vector<1x128xf32>
    %30 = vector.shape_cast %29 : vector<1x128xf32> to vector<1x1x128xf32>
    %31 = vector.broadcast %30 : vector<1x1x128xf32> to vector<4x8x128xf32>
    %32 = arith.mulf %28, %31 : vector<4x8x128xf32>
    %33 = arith.addf %25, %32 : vector<4x8x128xf32>
    %c0_19 = arith.constant 0 : index
    %c0_20 = arith.constant 0 : index
    %c1_21 = arith.constant 1 : index
    %c0_22 = arith.constant 0 : index
    %c128_23 = arith.constant 128 : index
    %34 = vector.load %arg2[%c0_19, %c0_20, %c1_21, %c0_22, %c128_23] : memref<1x4x2x9x256xbf16, #tpu.memory_space<vmem>>, vector<1x4x1x8x128xbf16>
    %35 = vector.shape_cast %34 : vector<1x4x1x8x128xbf16> to vector<4x8x128xbf16>
    %36 = arith.extf %35 : vector<4x8x128xbf16> to vector<4x8x128xf32>
    %37 = vector.extract_strided_slice %0 {offsets = [4, 0], sizes = [1, 128], strides = [1, 1]} : vector<9x128xf32> to vector<1x128xf32>
    %38 = vector.shape_cast %37 : vector<1x128xf32> to vector<1x1x128xf32>
    %39 = vector.broadcast %38 : vector<1x1x128xf32> to vector<4x8x128xf32>
    %40 = arith.mulf %36, %39 : vector<4x8x128xf32>
    %41 = arith.addf %33, %40 : vector<4x8x128xf32>
    %c0_24 = arith.constant 0 : index
    %c0_25 = arith.constant 0 : index
    %c1_26 = arith.constant 1 : index
    %c1_27 = arith.constant 1 : index
    %c0_28 = arith.constant 0 : index
    %42 = vector.load %arg2[%c0_24, %c0_25, %c1_26, %c1_27, %c0_28] : memref<1x4x2x9x256xbf16, #tpu.memory_space<vmem>>, vector<1x4x1x8x128xbf16>
    %43 = vector.shape_cast %42 : vector<1x4x1x8x128xbf16> to vector<4x8x128xbf16>
    %44 = arith.extf %43 : vector<4x8x128xbf16> to vector<4x8x128xf32>
    %45 = vector.extract_strided_slice %0 {offsets = [5, 0], sizes = [1, 128], strides = [1, 1]} : vector<9x128xf32> to vector<1x128xf32>
    %46 = vector.shape_cast %45 : vector<1x128xf32> to vector<1x1x128xf32>
    %47 = vector.broadcast %46 : vector<1x1x128xf32> to vector<4x8x128xf32>
    %48 = arith.mulf %44, %47 : vector<4x8x128xf32>
    %49 = arith.addf %41, %48 : vector<4x8x128xf32>
    %c0_29 = arith.constant 0 : index
    %c1_30 = arith.constant 1 : index
    %c0_31 = arith.constant 0 : index
    %c0_32 = arith.constant 0 : index
    %c0_33 = arith.constant 0 : index
    %50 = vector.load %arg2[%c0_29, %c1_30, %c0_31, %c0_32, %c0_33] : memref<1x4x2x9x256xbf16, #tpu.memory_space<vmem>>, vector<1x3x1x8x128xbf16>
    %51 = vector.shape_cast %50 : vector<1x3x1x8x128xbf16> to vector<3x8x128xbf16>
    %c0_34 = arith.constant 0 : index
    %c0_35 = arith.constant 0 : index
    %c0_36 = arith.constant 0 : index
    %c0_37 = arith.constant 0 : index
    %c0_38 = arith.constant 0 : index
    %52 = vector.load %arg3[%c0_34, %c0_35, %c0_36, %c0_37, %c0_38] : memref<1x1x2x9x256xbf16, #tpu.memory_space<vmem>>, vector<1x1x1x8x128xbf16>
    %53 = vector.shape_cast %52 : vector<1x1x1x8x128xbf16> to vector<1x8x128xbf16>
    %54 = tpu.concatenate %51, %53 in 0 : vector<3x8x128xbf16>, vector<1x8x128xbf16> -> vector<4x8x128xbf16>
    %55 = arith.extf %54 : vector<4x8x128xbf16> to vector<4x8x128xf32>
    %56 = vector.extract_strided_slice %0 {offsets = [6, 0], sizes = [1, 128], strides = [1, 1]} : vector<9x128xf32> to vector<1x128xf32>
    %57 = vector.shape_cast %56 : vector<1x128xf32> to vector<1x1x128xf32>
    %58 = vector.broadcast %57 : vector<1x1x128xf32> to vector<4x8x128xf32>
    %59 = arith.mulf %55, %58 : vector<4x8x128xf32>
    %60 = arith.addf %49, %59 : vector<4x8x128xf32>
    %c0_39 = arith.constant 0 : index
    %c1_40 = arith.constant 1 : index
    %c0_41 = arith.constant 0 : index
    %c0_42 = arith.constant 0 : index
    %c128_43 = arith.constant 128 : index
    %61 = vector.load %arg2[%c0_39, %c1_40, %c0_41, %c0_42, %c128_43] : memref<1x4x2x9x256xbf16, #tpu.memory_space<vmem>>, vector<1x3x1x8x128xbf16>
    %62 = vector.shape_cast %61 : vector<1x3x1x8x128xbf16> to vector<3x8x128xbf16>
    %c0_44 = arith.constant 0 : index
    %c0_45 = arith.constant 0 : index
    %c0_46 = arith.constant 0 : index
    %c0_47 = arith.constant 0 : index
    %c128_48 = arith.constant 128 : index
    %63 = vector.load %arg3[%c0_44, %c0_45, %c0_46, %c0_47, %c128_48] : memref<1x1x2x9x256xbf16, #tpu.memory_space<vmem>>, vector<1x1x1x8x128xbf16>
    %64 = vector.shape_cast %63 : vector<1x1x1x8x128xbf16> to vector<1x8x128xbf16>
    %65 = tpu.concatenate %62, %64 in 0 : vector<3x8x128xbf16>, vector<1x8x128xbf16> -> vector<4x8x128xbf16>
    %66 = arith.extf %65 : vector<4x8x128xbf16> to vector<4x8x128xf32>
    %67 = vector.extract_strided_slice %0 {offsets = [7, 0], sizes = [1, 128], strides = [1, 1]} : vector<9x128xf32> to vector<1x128xf32>
    %68 = vector.shape_cast %67 : vector<1x128xf32> to vector<1x1x128xf32>
    %69 = vector.broadcast %68 : vector<1x1x128xf32> to vector<4x8x128xf32>
    %70 = arith.mulf %66, %69 : vector<4x8x128xf32>
    %71 = arith.addf %60, %70 : vector<4x8x128xf32>
    %c0_49 = arith.constant 0 : index
    %c1_50 = arith.constant 1 : index
    %c0_51 = arith.constant 0 : index
    %c1_52 = arith.constant 1 : index
    %c0_53 = arith.constant 0 : index
    %72 = vector.load %arg2[%c0_49, %c1_50, %c0_51, %c1_52, %c0_53] : memref<1x4x2x9x256xbf16, #tpu.memory_space<vmem>>, vector<1x3x1x8x128xbf16>
    %73 = vector.shape_cast %72 : vector<1x3x1x8x128xbf16> to vector<3x8x128xbf16>
    %c0_54 = arith.constant 0 : index
    %c0_55 = arith.constant 0 : index
    %c0_56 = arith.constant 0 : index
    %c1_57 = arith.constant 1 : index
    %c0_58 = arith.constant 0 : index
    %74 = vector.load %arg3[%c0_54, %c0_55, %c0_56, %c1_57, %c0_58] : memref<1x1x2x9x256xbf16, #tpu.memory_space<vmem>>, vector<1x1x1x8x128xbf16>
    %75 = vector.shape_cast %74 : vector<1x1x1x8x128xbf16> to vector<1x8x128xbf16>
    %76 = tpu.concatenate %73, %75 in 0 : vector<3x8x128xbf16>, vector<1x8x128xbf16> -> vector<4x8x128xbf16>
    %77 = arith.extf %76 : vector<4x8x128xbf16> to vector<4x8x128xf32>
    %78 = vector.extract_strided_slice %0 {offsets = [8, 0], sizes = [1, 128], strides = [1, 1]} : vector<9x128xf32> to vector<1x128xf32>
    %79 = vector.shape_cast %78 : vector<1x128xf32> to vector<1x1x128xf32>
    %80 = vector.broadcast %79 : vector<1x1x128xf32> to vector<4x8x128xf32>
    %81 = arith.mulf %77, %80 : vector<4x8x128xf32>
    %82 = arith.addf %71, %81 : vector<4x8x128xf32>
    %83 = arith.truncf %82 : vector<4x8x128xf32> to vector<4x8x128xbf16>
    %c0_59 = arith.constant 0 : index
    %c0_60 = arith.constant 0 : index
    %c0_61 = arith.constant 0 : index
    %c0_62 = arith.constant 0 : index
    %84 = vector.load %arg5[%c0_59, %c0_60, %c0_61, %c0_62] : memref<1x4x8x128xbf16, #tpu.memory_space<vmem>>, vector<1x4x8x128xbf16>
    %85 = vector.shape_cast %84 : vector<1x4x8x128xbf16> to vector<4x8x128xbf16>
    %86 = vector.shape_cast %83 : vector<4x8x128xbf16> to vector<1x4x8x128xbf16>
    tpu.vector_store %arg5[%c0_59, %c0_60, %c0_61, %c0_62], %86 {strides = array<i32>} : memref<1x4x8x128xbf16, #tpu.memory_space<vmem>>, vector<1x4x8x128xbf16>,
    %cst_63 = arith.constant dense<0.000000e+00> : vector<8x128xf32>
    %87 = vector.multi_reduction <add>, %82, %cst_63 [0] : vector<4x8x128xf32> to vector<8x128xf32>
    %cst_64 = arith.constant dense<0.000000e+00> : vector<128xf32>
    %88 = vector.multi_reduction <add>, %87, %cst_64 [0] : vector<8x128xf32> to vector<128xf32>
    %89 = vector.shape_cast %88 : vector<128xf32> to vector<1x128xf32>
    %90 = arith.mulf %82, %82 : vector<4x8x128xf32>
    %cst_65 = arith.constant dense<0.000000e+00> : vector<8x128xf32>
    %91 = vector.multi_reduction <add>, %90, %cst_65 [0] : vector<4x8x128xf32> to vector<8x128xf32>
    %cst_66 = arith.constant dense<0.000000e+00> : vector<128xf32>
    %92 = vector.multi_reduction <add>, %91, %cst_66 [0] : vector<8x128xf32> to vector<128xf32>
    %93 = vector.shape_cast %92 : vector<128xf32> to vector<1x128xf32>
    %cst_67 = arith.constant 0.000000e+00 : f32
    %94 = vector.broadcast %cst_67 : f32 to vector<6x128xf32>
    %95 = tpu.concatenate %89, %93, %94 in 0 : vector<1x128xf32>, vector<1x128xf32>, vector<6x128xf32> -> vector<8x128xf32>
    %c0_68 = arith.constant 0 : index
    %c0_69 = arith.constant 0 : index
    %c0_70 = arith.constant 0 : index
    %c0_71 = arith.constant 0 : index
    %96 = vector.load %arg6[%c0_68, %c0_69, %c0_70, %c0_71] : memref<1x1x8x128xf32, #tpu.memory_space<vmem>>, vector<1x1x8x128xf32>
    %97 = vector.shape_cast %96 : vector<1x1x8x128xf32> to vector<8x128xf32>
    %98 = vector.shape_cast %95 : vector<8x128xf32> to vector<1x1x8x128xf32>
    tpu.vector_store %arg6[%c0_68, %c0_69, %c0_70, %c0_71], %98 {strides = array<i32>} : memref<1x1x8x128xf32, #tpu.memory_space<vmem>>, vector<1x1x8x128xf32>,
    return
  }
  func.func @transform_0(%arg0: i32, %arg1: i32) -> (i32, i32, i32, i32, i32) {
    %c0_i32 = arith.constant 0 : i32
    %c0_i32_0 = arith.constant 0 : i32
    %c0_i32_1 = arith.constant 0 : i32
    %c0_i32_2 = arith.constant 0 : i32
    return %arg0, %arg1, %c0_i32, %c0_i32_0, %c0_i32_1 : i32, i32, i32, i32, i32
  }
  func.func @transform_1(%arg0: i32, %arg1: i32) -> (i32, i32, i32, i32, i32) {
    %c4_i32 = arith.constant 4 : i32
    %0 = arith.muli %arg1, %c4_i32 : i32
    %c4_i32_0 = arith.constant 4 : i32
    %1 = arith.addi %0, %c4_i32_0 : i32
    %c0_i32 = arith.constant 0 : i32
    %c0_i32_1 = arith.constant 0 : i32
    %c0_i32_2 = arith.constant 0 : i32
    %c0_i32_3 = arith.constant 0 : i32
    return %arg0, %1, %c0_i32, %c0_i32_1, %c0_i32_2 : i32, i32, i32, i32, i32
  }
  func.func @transform_2(%arg0: i32, %arg1: i32) -> (i32, i32) {
    %c0_i32 = arith.constant 0 : i32
    %c0_i32_0 = arith.constant 0 : i32
    %c0_i32_1 = arith.constant 0 : i32
    return %c0_i32, %c0_i32_0 : i32, i32
  }
  func.func @transform_3(%arg0: i32, %arg1: i32) -> (i32, i32, i32, i32) {
    %c0_i32 = arith.constant 0 : i32
    %c0_i32_0 = arith.constant 0 : i32
    %c0_i32_1 = arith.constant 0 : i32
    return %arg0, %arg1, %c0_i32, %c0_i32_0 : i32, i32, i32, i32
  }
  func.func @transform_4(%arg0: i32, %arg1: i32) -> (i32, i32, i32, i32) {
    %c0_i32 = arith.constant 0 : i32
    %c0_i32_0 = arith.constant 0 : i32
    %c0_i32_1 = arith.constant 0 : i32
    return %arg0, %arg1, %c0_i32, %c0_i32_0 : i32, i32, i32, i32
  }
}

module attributes {stable_mosaic.version = 11 : i64} {
  func.func @_pw_kernel(%arg0: i32, %arg1: memref<128x128xbf16, #tpu.memory_space<vmem>>, %arg2: memref<128x128xbf16, #tpu.memory_space<vmem>>, %arg3: memref<1x128xf32, #tpu.memory_space<vmem>>, %arg4: memref<1x128xf32, #tpu.memory_space<vmem>>, %arg5: memref<128x128xbf16, #tpu.memory_space<vmem>>, %arg6: memref<1x8x128xf32, #tpu.memory_space<vmem>>) attributes {dimension_semantics = [#tpu.dimension_semantics<parallel>], iteration_bounds = array<i64: 1>, scalar_prefetch = 0 : i64, scratch_operands = 0 : i64, tpu.core_type = #tpu.core_type<tc>, window_params = [{transform_indices = @transform_0, window_bounds = array<i64: 128, 128>}, {pipeline_mode = #tpu.pipeline_mode<synchronous>, transform_indices = @transform_1, window_bounds = array<i64: 128, 128>}, {pipeline_mode = #tpu.pipeline_mode<synchronous>, transform_indices = @transform_2, window_bounds = array<i64: 1, 128>}, {pipeline_mode = #tpu.pipeline_mode<synchronous>, transform_indices = @transform_3, window_bounds = array<i64: 1, 128>}, {transform_indices = @transform_4, window_bounds = array<i64: 128, 128>}, {transform_indices = @transform_5, window_bounds = array<i64: 1, 8, 128>}]} {
    %c0 = arith.constant 0 : index
    %c0_0 = arith.constant 0 : index
    %0 = vector.load %arg1[%c0, %c0_0] : memref<128x128xbf16, #tpu.memory_space<vmem>>, vector<128x128xbf16>
    %1 = arith.extf %0 : vector<128x128xbf16> to vector<128x128xf32>
    %c0_1 = arith.constant 0 : index
    %c0_2 = arith.constant 0 : index
    %2 = vector.load %arg3[%c0_1, %c0_2] : memref<1x128xf32, #tpu.memory_space<vmem>>, vector<1x128xf32>
    %3 = vector.broadcast %2 : vector<1x128xf32> to vector<128x128xf32>
    %4 = arith.mulf %1, %3 : vector<128x128xf32>
    %c0_3 = arith.constant 0 : index
    %c0_4 = arith.constant 0 : index
    %5 = vector.load %arg4[%c0_3, %c0_4] : memref<1x128xf32, #tpu.memory_space<vmem>>, vector<1x128xf32>
    %6 = vector.broadcast %5 : vector<1x128xf32> to vector<128x128xf32>
    %7 = arith.addf %4, %6 : vector<128x128xf32>
    %8 = arith.truncf %7 : vector<128x128xf32> to vector<128x128xbf16>
    %c0_5 = arith.constant 0 : index
    %c0_6 = arith.constant 0 : index
    %9 = vector.load %arg2[%c0_5, %c0_6] : memref<128x128xbf16, #tpu.memory_space<vmem>>, vector<128x128xbf16>
    %cst = arith.constant dense<0.000000e+00> : vector<128x128xf32>
    %10 = tpu.matmul %8, %9, %cst {dimension_numbers = #tpu.dot_dimension_numbers<[1], [0], [0], [1], [0, 0, 1, 1], [], []>} : vector<128x128xbf16>, vector<128x128xbf16>, vector<128x128xf32> -> vector<128x128xf32>
    %11 = arith.truncf %10 : vector<128x128xf32> to vector<128x128xbf16>
    %c0_7 = arith.constant 0 : index
    %c0_8 = arith.constant 0 : index
    %12 = vector.load %arg5[%c0_7, %c0_8] : memref<128x128xbf16, #tpu.memory_space<vmem>>, vector<128x128xbf16>
    tpu.vector_store %arg5[%c0_7, %c0_8], %11 {strides = array<i32>} : memref<128x128xbf16, #tpu.memory_space<vmem>>, vector<128x128xbf16>,
    %cst_9 = arith.constant dense<0.000000e+00> : vector<128xf32>
    %13 = vector.multi_reduction <add>, %10, %cst_9 [0] : vector<128x128xf32> to vector<128xf32>
    %14 = vector.shape_cast %13 : vector<128xf32> to vector<1x128xf32>
    %15 = arith.mulf %10, %10 : vector<128x128xf32>
    %cst_10 = arith.constant dense<0.000000e+00> : vector<128xf32>
    %16 = vector.multi_reduction <add>, %15, %cst_10 [0] : vector<128x128xf32> to vector<128xf32>
    %17 = vector.shape_cast %16 : vector<128xf32> to vector<1x128xf32>
    %cst_11 = arith.constant 0.000000e+00 : f32
    %18 = vector.broadcast %cst_11 : f32 to vector<6x128xf32>
    %19 = tpu.concatenate %14, %17, %18 in 0 : vector<1x128xf32>, vector<1x128xf32>, vector<6x128xf32> -> vector<8x128xf32>
    %c0_12 = arith.constant 0 : index
    %c0_13 = arith.constant 0 : index
    %c0_14 = arith.constant 0 : index
    %20 = vector.load %arg6[%c0_12, %c0_13, %c0_14] : memref<1x8x128xf32, #tpu.memory_space<vmem>>, vector<1x8x128xf32>
    %21 = vector.shape_cast %20 : vector<1x8x128xf32> to vector<8x128xf32>
    %22 = vector.shape_cast %19 : vector<8x128xf32> to vector<1x8x128xf32>
    tpu.vector_store %arg6[%c0_12, %c0_13, %c0_14], %22 {strides = array<i32>} : memref<1x8x128xf32, #tpu.memory_space<vmem>>, vector<1x8x128xf32>,
    return
  }
  func.func @transform_0(%arg0: i32) -> (i32, i32) {
    %c0_i32 = arith.constant 0 : i32
    %c0_i32_0 = arith.constant 0 : i32
    return %arg0, %c0_i32 : i32, i32
  }
  func.func @transform_1(%arg0: i32) -> (i32, i32) {
    %c0_i32 = arith.constant 0 : i32
    %c0_i32_0 = arith.constant 0 : i32
    %c0_i32_1 = arith.constant 0 : i32
    return %c0_i32, %c0_i32_0 : i32, i32
  }
  func.func @transform_2(%arg0: i32) -> (i32, i32) {
    %c0_i32 = arith.constant 0 : i32
    %c0_i32_0 = arith.constant 0 : i32
    %c0_i32_1 = arith.constant 0 : i32
    return %c0_i32, %c0_i32_0 : i32, i32
  }
  func.func @transform_3(%arg0: i32) -> (i32, i32) {
    %c0_i32 = arith.constant 0 : i32
    %c0_i32_0 = arith.constant 0 : i32
    %c0_i32_1 = arith.constant 0 : i32
    return %c0_i32, %c0_i32_0 : i32, i32
  }
  func.func @transform_4(%arg0: i32) -> (i32, i32) {
    %c0_i32 = arith.constant 0 : i32
    %c0_i32_0 = arith.constant 0 : i32
    return %arg0, %c0_i32 : i32, i32
  }
  func.func @transform_5(%arg0: i32) -> (i32, i32, i32) {
    %c0_i32 = arith.constant 0 : i32
    %c0_i32_0 = arith.constant 0 : i32
    %c0_i32_1 = arith.constant 0 : i32
    return %arg0, %c0_i32, %c0_i32_0 : i32, i32, i32
  }
}

</mosaic_0001>

<llo_original>
// kernel: down_block_forward.9
$region0: #{down_block_forward.9}
  #allocation0 [shape = 'u32[]', space=smem, size = 0x4, offset = 0x4, fixed_abs, tag = 'smem constant byte address 0x4 - core index']
  #allocation1 [shape = 'u32[144,128]{1,0:T(1,128)}', space=vmem, size = 0x12000, scoped, tag = 'internal scratch']
  %s0 = inlined_call_operand.vmem [shape: bf16[128,128], index: 0, kind: input, shape index: {}]
  %s1 = inlined_call_operand.vmem [shape: bf16[128,128], index: 1, kind: input, shape index: {}]
  %s2 = inlined_call_operand.vmem [shape: f32[1,128], index: 2, kind: input, shape index: {}]
  %s3 = inlined_call_operand.vmem [shape: f32[1,128], index: 3, kind: input, shape index: {}]
  %s4 = inlined_call_operand.vmem [shape: bf16[128,128], index: 4, kind: output, shape index: {0}]
  %s5 = inlined_call_operand.vmem [shape: f32[1,8,128], index: 5, kind: output, shape index: {1}]
  %6 = xla_tuple %s4, %s5
  %s7 = sld [smem:[#allocation0]]
  $region34: #{down_block_forward.9} parent=0
    _
  %s9 = ssub.s32 1, %s7
  %s10 = scalar_select 0, %s9, %s7
  // Predicated region
  $region2: #{down_block_forward.9} parent=0 // pred_check
    _
  $region3: #{down_block_forward.9} parent=0 // pred_check_branch
    %12 = sbr.rel (0) target = $region5
  $region4: #{down_block_forward.9} parent=0 // pred_region
    _
  $region5: #{down_block_forward.9} parent=0 // pred_fallthru
    _
  // Predicated region
  $region6: #{down_block_forward.9} parent=0 // pred_check
    _
  $region7: #{down_block_forward.9} parent=0 // pred_check_branch
    %14 = sbr.rel (0) target = $region9
  $region8: #{down_block_forward.9} parent=0 // pred_region
    _
  $region9: #{down_block_forward.9} parent=0 // pred_fallthru
    _
  // Predicated region
  $region10: #{down_block_forward.9} parent=0 // pred_check
    _
  $region11: #{down_block_forward.9} parent=0 // pred_check_branch
    %16 = sbr.rel (0) target = $region13
  $region12: #{down_block_forward.9} parent=0 // pred_region
    _
  $region13: #{down_block_forward.9} parent=0 // pred_fallthru
    _
  // Predicated region
  $region14: #{down_block_forward.9} parent=0 // pred_check
    _
  $region15: #{down_block_forward.9} parent=0 // pred_check_branch
    %18 = sbr.rel (0) target = $region17
  $region16: #{down_block_forward.9} parent=0 // pred_region
    _
  $region17: #{down_block_forward.9} parent=0 // pred_fallthru
    _
  %v20 = vld [vmem:[%s0] sm:$0xf]
  %v21 = vld [vmem:[%s0 + $0x4] sm:$0xf]
  %v22 = vld [vmem:[%s0 + $0x8] sm:$0xf]
  %v23 = vld [vmem:[%s0 + $0xc] sm:$0xf]
  %v24 = vld [vmem:[%s0 + $0x10] sm:$0xf]
  %v25 = vld [vmem:[%s0 + $0x14] sm:$0xf]
  %v26 = vld [vmem:[%s0 + $0x18] sm:$0xf]
  %v27 = vld [vmem:[%s0 + $0x1c] sm:$0xf]
  %v28 = vld [vmem:[%s0 + $0x20] sm:$0xf]
  %v29 = vld [vmem:[%s0 + $0x24] sm:$0xf]
  %v30 = vld [vmem:[%s0 + $0x28] sm:$0xf]
  %v31 = vld [vmem:[%s0 + $0x2c] sm:$0xf]
  %v32 = vld [vmem:[%s0 + $0x30] sm:$0xf]
  %v33 = vld [vmem:[%s0 + $0x34] sm:$0xf]
  %v34 = vld [vmem:[%s0 + $0x38] sm:$0xf]
  %v35 = vld [vmem:[%s0 + $0x3c] sm:$0xf]
  %v36 = vunpack.c.l.bf16 %v20
  %v37 = vunpack.c.l.bf16 %v21
  %v38 = vunpack.c.l.bf16 %v22
  %v39 = vunpack.c.l.bf16 %v23
  %v40 = vunpack.c.l.bf16 %v24
  %v41 = vunpack.c.l.bf16 %v25
  %v42 = vunpack.c.l.bf16 %v26
  %v43 = vunpack.c.l.bf16 %v27
  %v44 = vunpack.c.l.bf16 %v28
  %v45 = vunpack.c.l.bf16 %v29
  %v46 = vunpack.c.l.bf16 %v30
  %v47 = vunpack.c.l.bf16 %v31
  %v48 = vunpack.c.l.bf16 %v32
  %v49 = vunpack.c.l.bf16 %v33
  %v50 = vunpack.c.l.bf16 %v34
  %v51 = vunpack.c.l.bf16 %v35
  %v52 = vld [vmem:[%s2] sm:$0x1]
  %v54 = vlaneseq
  %v55 = vshrl.u32 %v54, 7
  %v56 = vsub.s32 0, %v55
  %v57 = vrot.slane %v52, %v56
  %v59 = vmul.f32 %v36, %v57
  %v60 = vmul.f32 %v37, %v57
  %v61 = vmul.f32 %v38, %v57
  %v62 = vmul.f32 %v39, %v57
  %v63 = vmul.f32 %v40, %v57
  %v64 = vmul.f32 %v41, %v57
  %v65 = vmul.f32 %v42, %v57
  %v66 = vmul.f32 %v43, %v57
  %v67 = vmul.f32 %v44, %v57
  %v68 = vmul.f32 %v45, %v57
  %v69 = vmul.f32 %v46, %v57
  %v70 = vmul.f32 %v47, %v57
  %v71 = vmul.f32 %v48, %v57
  %v72 = vmul.f32 %v49, %v57
  %v73 = vmul.f32 %v50, %v57
  %v74 = vmul.f32 %v51, %v57
  %v75 = vld [vmem:[%s3] sm:$0x1]
  %v77 = vlaneseq
  %v78 = vshrl.u32 %v77, 7
  %v79 = vsub.s32 0, %v78
  %v80 = vrot.slane %v75, %v79
  %v82 = vadd.f32 %v59, %v80
  %v83 = vadd.f32 %v60, %v80
  %v84 = vadd.f32 %v61, %v80
  %v85 = vadd.f32 %v62, %v80
  %v86 = vadd.f32 %v63, %v80
  %v87 = vadd.f32 %v64, %v80
  %v88 = vadd.f32 %v65, %v80
  %v89 = vadd.f32 %v66, %v80
  %v90 = vadd.f32 %v67, %v80
  %v91 = vadd.f32 %v68, %v80
  %v92 = vadd.f32 %v69, %v80
  %v93 = vadd.f32 %v70, %v80
  %v94 = vadd.f32 %v71, %v80
  %v95 = vadd.f32 %v72, %v80
  %v96 = vadd.f32 %v73, %v80
  %v97 = vadd.f32 %v74, %v80
  %v98 = vpack.c.bf16 %v83, %v82
  %v99 = vpack.c.bf16 %v85, %v84
  %v100 = vpack.c.bf16 %v87, %v86
  %v101 = vpack.c.bf16 %v89, %v88
  %v102 = vpack.c.bf16 %v91, %v90
  %v103 = vpack.c.bf16 %v93, %v92
  %v104 = vpack.c.bf16 %v95, %v94
  %v105 = vpack.c.bf16 %v97, %v96
  %v106 = vld [vmem:[%s1] sm:$0xf]
  %v107 = vld [vmem:[%s1 + $0x4] sm:$0xf]
  %v108 = vld [vmem:[%s1 + $0x8] sm:$0xf]
  %v109 = vld [vmem:[%s1 + $0xc] sm:$0xf]
  %v110 = vld [vmem:[%s1 + $0x10] sm:$0xf]
  %v111 = vld [vmem:[%s1 + $0x14] sm:$0xf]
  %v112 = vld [vmem:[%s1 + $0x18] sm:$0xf]
  %v113 = vld [vmem:[%s1 + $0x1c] sm:$0xf]
  %v114 = vld [vmem:[%s1 + $0x20] sm:$0xf]
  %v115 = vld [vmem:[%s1 + $0x24] sm:$0xf]
  %v116 = vld [vmem:[%s1 + $0x28] sm:$0xf]
  %v117 = vld [vmem:[%s1 + $0x2c] sm:$0xf]
  %v118 = vld [vmem:[%s1 + $0x30] sm:$0xf]
  %v119 = vld [vmem:[%s1 + $0x34] sm:$0xf]
  %v120 = vld [vmem:[%s1 + $0x38] sm:$0xf]
  %v121 = vld [vmem:[%s1 + $0x3c] sm:$0xf]
  %v138 = vunpack.c.l.b16 %v106
  %v139 = vunpack.c.l.b16 %v107
  %v140 = vunpack.c.l.b16 %v108
  %v141 = vunpack.c.l.b16 %v109
  %v142 = vunpack.c.l.b16 %v110
  %v143 = vunpack.c.l.b16 %v111
  %v144 = vunpack.c.l.b16 %v112
  %v145 = vunpack.c.l.b16 %v113
  %v146 = vunpack.c.l.b16 %v114
  %v147 = vunpack.c.l.b16 %v115
  %v148 = vunpack.c.l.b16 %v116
  %v149 = vunpack.c.l.b16 %v117
  %v150 = vunpack.c.l.b16 %v118
  %v151 = vunpack.c.l.b16 %v119
  %v152 = vunpack.c.l.b16 %v120
  %v153 = vunpack.c.l.b16 %v121
  %v154 = vpack.c.b16 %v139, %v138
  %v155 = vpack.c.b16 %v141, %v140
  %v156 = vpack.c.b16 %v143, %v142
  %v157 = vpack.c.b16 %v145, %v144
  %v158 = vpack.c.b16 %v147, %v146
  %v159 = vpack.c.b16 %v149, %v148
  %v160 = vpack.c.b16 %v151, %v150
  %v161 = vpack.c.b16 %v153, %v152
  %170 = vmatprep.subr.bf16.mxu0 0
  %171 = vmatpush1.bf16.msra.mxu0 %v161
  %172 = vmatprep.subr.bf16.mxu0 0
  %173 = vmatpush1.bf16.msra.mxu0 %v160
  %174 = vmatprep.subr.bf16.mxu0 0
  %175 = vmatpush1.bf16.msra.mxu0 %v159
  %176 = vmatprep.subr.bf16.mxu0 0
  %177 = vmatpush1.bf16.msra.mxu0 %v158
  %178 = vmatprep.subr.bf16.mxu0 0
  %179 = vmatpush1.bf16.msra.mxu0 %v157
  %180 = vmatprep.subr.bf16.mxu0 0
  %181 = vmatpush1.bf16.msra.mxu0 %v156
  %182 = vmatprep.subr.bf16.mxu0 0
  %183 = vmatpush1.bf16.msra.mxu0 %v155
  %184 = vmatprep.subr.bf16.mxu0 0
  %185 = vmatpush1.bf16.msra.mxu0 %v154
  %186 = vmatprep.subr.bf16.mxu0 0
  %187 = vmatpush2.bf16.msra.mxu0 0
  %188 = vmatprep.subr.bf16.mxu0 0
  %189 = vmatpush2.bf16.msra.mxu0 0
  %190 = vmatprep.subr.bf16.mxu0 0
  %191 = vmatpush2.bf16.msra.mxu0 0
  %192 = vmatprep.subr.bf16.mxu0 0
  %193 = vmatpush2.bf16.msra.mxu0 0
  %194 = vmatprep.subr.bf16.mxu0 0
  %195 = vmatpush2.bf16.msra.mxu0 0
  %196 = vmatprep.subr.bf16.mxu0 0
  %197 = vmatpush2.bf16.msra.mxu0 0
  %198 = vmatprep.subr.bf16.mxu0 0
  %199 = vmatpush2.bf16.msra.mxu0 0
  %200 = vmatprep.subr.bf16.mxu0 0
  %201 = vmatpush2.bf16.msra.mxu0 0
  %202 = vmatprep.mubr.bf16.mxu0 0
  %203 = vmatmul.mubr.bf16.gmra.mxu0 %v98
  %v204 = vpop.f32.mrf.mxu0
  %v205 = vadd.f32 0.0, %v204
  %v206 = vpop.f32.mrf.mxu0
  %v207 = vpop.f32.mrf.mxu0
  %v208 = vadd.f32 0.0, %v207
  %v209 = vpop.f32.mrf.mxu0
  %210 = vmatprep.mubr.bf16.mxu0 0
  %211 = vmatmul.mubr.bf16.gmra.mxu0 %v99
  %v212 = vpop.f32.mrf.mxu0
  %v213 = vadd.f32 0.0, %v212
  %v214 = vpop.f32.mrf.mxu0
  %v215 = vpop.f32.mrf.mxu0
  %v216 = vadd.f32 0.0, %v215
  %v217 = vpop.f32.mrf.mxu0
  %218 = vmatprep.mubr.bf16.mxu0 0
  %219 = vmatmul.mubr.bf16.gmra.mxu0 %v100
  %v220 = vpop.f32.mrf.mxu0
  %v221 = vadd.f32 0.0, %v220
  %v222 = vpop.f32.mrf.mxu0
  %v223 = vpop.f32.mrf.mxu0
  %v224 = vadd.f32 0.0, %v223
  %v225 = vpop.f32.mrf.mxu0
  %226 = vmatprep.mubr.bf16.mxu0 0
  %227 = vmatmul.mubr.bf16.gmra.mxu0 %v101
  %v228 = vpop.f32.mrf.mxu0
  %v229 = vadd.f32 0.0, %v228
  %v230 = vpop.f32.mrf.mxu0
  %v231 = vpop.f32.mrf.mxu0
  %v232 = vadd.f32 0.0, %v231
  %v233 = vpop.f32.mrf.mxu0
  %234 = vmatprep.mubr.bf16.mxu0 0
  %235 = vmatmul.mubr.bf16.gmra.mxu0 %v102
  %v236 = vpop.f32.mrf.mxu0
  %v237 = vadd.f32 0.0, %v236
  %v238 = vpop.f32.mrf.mxu0
  %v239 = vpop.f32.mrf.mxu0
  %v240 = vadd.f32 0.0, %v239
  %v241 = vpop.f32.mrf.mxu0
  %242 = vmatprep.mubr.bf16.mxu0 0
  %243 = vmatmul.mubr.bf16.gmra.mxu0 %v103
  %v244 = vpop.f32.mrf.mxu0
  %v245 = vadd.f32 0.0, %v244
  %v246 = vpop.f32.mrf.mxu0
  %v247 = vpop.f32.mrf.mxu0
  %v248 = vadd.f32 0.0, %v247
  %v249 = vpop.f32.mrf.mxu0
  %250 = vmatprep.mubr.bf16.mxu0 0
  %251 = vmatmul.mubr.bf16.gmra.mxu0 %v104
  %v252 = vpop.f32.mrf.mxu0
  %v253 = vadd.f32 0.0, %v252
  %v254 = vpop.f32.mrf.mxu0
  %v255 = vpop.f32.mrf.mxu0
  %v256 = vadd.f32 0.0, %v255
  %v257 = vpop.f32.mrf.mxu0
  %258 = vmatprep.mubr.bf16.mxu0 0
  %259 = vmatmul.mubr.bf16.gmra.mxu0 %v105
  %v260 = vpop.f32.mrf.mxu0
  %v261 = vadd.f32 0.0, %v260
  %v262 = vpop.f32.mrf.mxu0
  %v263 = vpop.f32.mrf.mxu0
  %v264 = vadd.f32 0.0, %v263
  %v265 = vpop.f32.mrf.mxu0
  %266 = vdwg.mxu0
  %v267 = vpack.c.bf16 %v208, %v205
  %v268 = vpack.c.bf16 %v216, %v213
  %v269 = vpack.c.bf16 %v224, %v221
  %v270 = vpack.c.bf16 %v232, %v229
  %v271 = vpack.c.bf16 %v240, %v237
  %v272 = vpack.c.bf16 %v248, %v245
  %v273 = vpack.c.bf16 %v256, %v253
  %v274 = vpack.c.bf16 %v264, %v261
  %v283 = vunpack.c.l.b16 %v267
  %v284 = vunpack.c.h.b16 %v267
  %v285 = vunpack.c.l.b16 %v268
  %v286 = vunpack.c.h.b16 %v268
  %v287 = vunpack.c.l.b16 %v269
  %v288 = vunpack.c.h.b16 %v269
  %v289 = vunpack.c.l.b16 %v270
  %v290 = vunpack.c.h.b16 %v270
  %v291 = vunpack.c.l.b16 %v271
  %v292 = vunpack.c.h.b16 %v271
  %v293 = vunpack.c.l.b16 %v272
  %v294 = vunpack.c.h.b16 %v272
  %v295 = vunpack.c.l.b16 %v273
  %v296 = vunpack.c.h.b16 %v273
  %v297 = vunpack.c.l.b16 %v274
  %v298 = vunpack.c.h.b16 %v274
  %v299 = vpack.c.b16 %v283, %v283
  %v300 = vpack.c.b16 %v284, %v284
  %v301 = vpack.c.b16 %v285, %v285
  %v302 = vpack.c.b16 %v286, %v286
  %v303 = vpack.c.b16 %v287, %v287
  %v304 = vpack.c.b16 %v288, %v288
  %v305 = vpack.c.b16 %v289, %v289
  %v306 = vpack.c.b16 %v290, %v290
  %v307 = vpack.c.b16 %v291, %v291
  %v308 = vpack.c.b16 %v292, %v292
  %v309 = vpack.c.b16 %v293, %v293
  %v310 = vpack.c.b16 %v294, %v294
  %v311 = vpack.c.b16 %v295, %v295
  %v312 = vpack.c.b16 %v296, %v296
  %v313 = vpack.c.b16 %v297, %v297
  %v314 = vpack.c.b16 %v298, %v298
  %331 = vst [vmem:[%s4] sm:$0xf] %v299
  %332 = vst [vmem:[%s4 + $0x4] sm:$0xf] %v300
  %333 = vst [vmem:[%s4 + $0x8] sm:$0xf] %v301
  %334 = vst [vmem:[%s4 + $0xc] sm:$0xf] %v302
  %335 = vst [vmem:[%s4 + $0x10] sm:$0xf] %v303
  %336 = vst [vmem:[%s4 + $0x14] sm:$0xf] %v304
  %337 = vst [vmem:[%s4 + $0x18] sm:$0xf] %v305
  %338 = vst [vmem:[%s4 + $0x1c] sm:$0xf] %v306
  %339 = vst [vmem:[%s4 + $0x20] sm:$0xf] %v307
  %340 = vst [vmem:[%s4 + $0x24] sm:$0xf] %v308
  %341 = vst [vmem:[%s4 + $0x28] sm:$0xf] %v309
  %342 = vst [vmem:[%s4 + $0x2c] sm:$0xf] %v310
  %343 = vst [vmem:[%s4 + $0x30] sm:$0xf] %v311
  %344 = vst [vmem:[%s4 + $0x34] sm:$0xf] %v312
  %345 = vst [vmem:[%s4 + $0x38] sm:$0xf] %v313
  %346 = vst [vmem:[%s4 + $0x3c] sm:$0xf] %v314
  %v347 = vadd.f32 %v205, %v208
  %v348 = vadd.f32 %v347, %v213
  %v349 = vadd.f32 %v348, %v216
  %v350 = vadd.f32 %v349, %v221
  %v351 = vadd.f32 %v350, %v224
  %v352 = vadd.f32 %v351, %v229
  %v353 = vadd.f32 %v352, %v232
  %v354 = vadd.f32 %v353, %v237
  %v355 = vadd.f32 %v354, %v240
  %v356 = vadd.f32 %v355, %v245
  %v357 = vadd.f32 %v356, %v248
  %v358 = vadd.f32 %v357, %v253
  %v359 = vadd.f32 %v358, %v256
  %v360 = vadd.f32 %v359, %v261
  %v361 = vadd.f32 %v360, %v264
  %v362 = vrot.slane %v361, 4
  %v363 = vadd.f32 %v361, %v362
  %v364 = vrot.slane %v363, 2
  %v365 = vadd.f32 %v363, %v364
  %v366 = vrot.slane %v365, 1
  %v367 = vadd.f32 %v365, %v366
  %v368 = vmul.f32 %v205, %v205
  %v369 = vmul.f32 %v208, %v208
  %v370 = vmul.f32 %v213, %v213
  %v371 = vmul.f32 %v216, %v216
  %v372 = vmul.f32 %v221, %v221
  %v373 = vmul.f32 %v224, %v224
  %v374 = vmul.f32 %v229, %v229
  %v375 = vmul.f32 %v232, %v232
  %v376 = vmul.f32 %v237, %v237
  %v377 = vmul.f32 %v240, %v240
  %v378 = vmul.f32 %v245, %v245
  %v379 = vmul.f32 %v248, %v248
  %v380 = vmul.f32 %v253, %v253
  %v381 = vmul.f32 %v256, %v256
  %v382 = vmul.f32 %v261, %v261
  %v383 = vmul.f32 %v264, %v264
  %v384 = vadd.f32 %v368, %v369
  %v385 = vadd.f32 %v384, %v370
  %v386 = vadd.f32 %v385, %v371
  %v387 = vadd.f32 %v386, %v372
  %v388 = vadd.f32 %v387, %v373
  %v389 = vadd.f32 %v388, %v374
  %v390 = vadd.f32 %v389, %v375
  %v391 = vadd.f32 %v390, %v376
  %v392 = vadd.f32 %v391, %v377
  %v393 = vadd.f32 %v392, %v378
  %v394 = vadd.f32 %v393, %v379
  %v395 = vadd.f32 %v394, %v380
  %v396 = vadd.f32 %v395, %v381
  %v397 = vadd.f32 %v396, %v382
  %v398 = vadd.f32 %v397, %v383
  %v399 = vrot.slane %v398, 4
  %v400 = vadd.f32 %v398, %v399
  %v401 = vrot.slane %v400, 2
  %v402 = vadd.f32 %v400, %v401
  %v403 = vrot.slane %v402, 1
  %v404 = vadd.f32 %v402, %v403
  %vm405 = vcmask 1040384
  %v406 = vsel %vm405, %v367, %v404
  %vm407 = vcmask 1041408
  %v408 = vsel %vm407, %v406, 0.0
  %409 = vst [vmem:[%s5] sm:$0xff] %v408
  // Predicated region
  $region18: #{down_block_forward.9} parent=0 // pred_check
    _
  $region19: #{down_block_forward.9} parent=0 // pred_check_branch
    %411 = sbr.rel (0) target = $region21
  $region20: #{down_block_forward.9} parent=0 // pred_region
    _
  $region21: #{down_block_forward.9} parent=0 // pred_fallthru
    _
  // Predicated region
  $region22: #{down_block_forward.9} parent=0 // pred_check
    _
  $region23: #{down_block_forward.9} parent=0 // pred_check_branch
    %413 = sbr.rel (0) target = $region25
  $region24: #{down_block_forward.9} parent=0 // pred_region
    _
  $region25: #{down_block_forward.9} parent=0 // pred_fallthru
    _
  // Predicated region
  $region26: #{down_block_forward.9} parent=0 // pred_check
    _
  $region27: #{down_block_forward.9} parent=0 // pred_check_branch
    %415 = sbr.rel (0) target = $region29
  $region28: #{down_block_forward.9} parent=0 // pred_region
    _
  $region29: #{down_block_forward.9} parent=0 // pred_fallthru
    _
  // Predicated region
  $region30: #{down_block_forward.9} parent=0 // pred_check
    _
  $region31: #{down_block_forward.9} parent=0 // pred_check_branch
    %417 = sbr.rel (0) target = $region33
  $region32: #{down_block_forward.9} parent=0 // pred_region
    _
  $region33: #{down_block_forward.9} parent=0 // pred_fallthru
    _

// kernel: down_block_forward.8
$region0: #{down_block_forward.8}
  #allocation0 [shape = 'u32[]', space=smem, size = 0x4, offset = 0x4, fixed_abs, tag = 'smem constant byte address 0x4 - core index']
  #allocation1 [shape = 'u32[144,128]{1,0:T(1,128)}', space=vmem, size = 0x12000, scoped, tag = 'internal scratch']
  %s0 = inlined_call_operand.vmem [shape: bf16[2,9,2,9,256], index: 0, kind: input, shape index: {}, may-alias: {0,1}]
  %s1 = inlined_call_operand.vmem [shape: bf16[2,9,2,9,256], index: 1, kind: input, shape index: {}, may-alias: {0,1}]
  %s2 = inlined_call_operand.vmem [shape: f32[9,128], index: 2, kind: input, shape index: {}]
  %s3 = inlined_call_operand.vmem [shape: bf16[2,8,8,128], index: 3, kind: output, shape index: {0}]
  %s4 = inlined_call_operand.vmem [shape: f32[2,2,8,128], index: 4, kind: output, shape index: {1}]
  %5 = xla_tuple %s3, %s4
  %s6 = sld [smem:[#allocation0]]
  $region53: #{down_block_forward.8} parent=0
    _
  %s8 = ssub.s32 1, %s6
  %s9 = scalar_select 0, %s8, %s6
  loop: start=0, step=1, limit=6
  $region2: #{down_block_forward.8} parent=0 // loop_pre_header
    _
  $region3: #{down_block_forward.8} parent=0 // loop_header
    %s11 = sphi 0, %s15
    %p12 = scmp.ge.s32.totalorder %s11, 6
    %s18 = sphi 0, %s30
    %s19 = sphi 0, %s26
    %s20 = sphi 0, %s18
    %s21 = sphi 0, %s19
    %s22 = sphi 0, %s20
    %s23 = sphi 0, %s21
    %s35 = sphi 0, %s37
    %s38 = sphi 0, %s35
    %s39 = sphi 0, %s38
    %s55 = sphi 0, %s39
    %s67 = sphi 0, %s69
    %s70 = sphi 0, %s67
    %s71 = sphi 0, %s70
    %s87 = sphi 0, %s71
    %s91 = sphi 0, %s91
    %s93 = sphi 0, %s91
    %s94 = sphi 0, %s93
    %s108 = sphi 0, %s94
    %s116 = sphi 0, %s118
    %s119 = sphi 0, %s116
    %s120 = sphi 0, %s119
    %s136 = sphi 0, %s120
    %s144 = sphi 0, %s146
    %s147 = sphi 0, %s144
    %s148 = sphi 0, %s147
    %s164 = sphi 0, %s148
  $region4: #{down_block_forward.8} parent=0 // loop_header_branch
    %14 = sbr.rel (%p12) target = $region8
  $region5: #{down_block_forward.8} parent=0 // loop_body
    %s16 = ssub.s32 %s11, 1
    %s17 = ssub.s32 %s11, 2
    %s24 = sadd.s32 1, %s19
    %p25 = scmp.ge.s32.totalorder %s24, 2
    %s26 = scalar_select %p25, 0, %s24
    %s27 = sadd.s32 1, %s18
    %s28 = scalar_select %p25, %s27, %s18
    %p29 = scmp.ge.s32.totalorder %s28, 2
    %s30 = scalar_select %p29, 0, %s28
    %s31 = ssub.s32 %s18, %s30
    %s32 = ssub.s32 %s19, %s26
    %s33 = sor.u32 %s31, %s32
    %p34 = scmp.eq.s32.totalorder %s33, 0
    %s36 = sadd.s32 %s35, 1
    %s37 = scalar_select %p34, %s35, %s36
    %p40 = pneg %p34
    %p41 = scmp.eq.s32.totalorder %s11, 3
    %p42 = por %p40, %p41
    %p43 = scmp.ne.s32.totalorder %s35, %s38
    %p44 = scmp.eq.s32.totalorder %s11, 0
    %p45 = por %p43, %p44
    %p46 = scmp.ne.s32.totalorder %s35, %s38
    %p47 = scmp.eq.s32.totalorder %s16, 3
    %p48 = por %p46, %p47
    %p49 = scmp.ne.s32.totalorder %s38, %s39
    %p50 = scmp.eq.s32.totalorder %s16, 0
    %p51 = por %p49, %p50
    %p52 = scmp.ne.s32.totalorder %s38, %s39
    %p53 = scmp.eq.s32.totalorder %s17, 3
    %p54 = por %p52, %p53
    %p56 = scmp.ne.s32.totalorder %s39, %s55
    %p57 = scmp.eq.s32.totalorder %s17, 0
    %p58 = por %p56, %p57
    %s59 = smul.u32 %s19, 4
    %s60 = sadd.s32 %s59, 4
    %s61 = smul.u32 %s26, 4
    %s62 = sadd.s32 %s61, 4
    %s63 = ssub.s32 %s18, %s30
    %s64 = ssub.s32 %s60, %s62
    %s65 = sor.u32 %s63, %s64
    %p66 = scmp.eq.s32.totalorder %s65, 0
    %s68 = sadd.s32 %s67, 1
    %s69 = scalar_select %p66, %s67, %s68
    %p72 = pneg %p66
    %p73 = scmp.eq.s32.totalorder %s11, 3
    %p74 = por %p72, %p73
    %p75 = scmp.ne.s32.totalorder %s67, %s70
    %p76 = scmp.eq.s32.totalorder %s11, 0
    %p77 = por %p75, %p76
    %p78 = scmp.ne.s32.totalorder %s67, %s70
    %p79 = scmp.eq.s32.totalorder %s16, 3
    %p80 = por %p78, %p79
    %p81 = scmp.ne.s32.totalorder %s70, %s71
    %p82 = scmp.eq.s32.totalorder %s16, 0
    %p83 = por %p81, %p82
    %p84 = scmp.ne.s32.totalorder %s70, %s71
    %p85 = scmp.eq.s32.totalorder %s17, 3
    %p86 = por %p84, %p85
    %p88 = scmp.ne.s32.totalorder %s71, %s87
    %p89 = scmp.eq.s32.totalorder %s17, 0
    %p90 = por %p88, %p89
    %s92 = sadd.s32 %s91, 1
    %p95 = scmp.eq.s32.totalorder %s11, 3
    %p96 = scmp.ne.s32.totalorder %s91, %s93
    %p97 = scmp.eq.s32.totalorder %s11, 0
    %p98 = por %p96, %p97
    %p99 = scmp.ne.s32.totalorder %s91, %s93
    %p100 = scmp.eq.s32.totalorder %s16, 3
    %p101 = por %p99, %p100
    %p102 = scmp.ne.s32.totalorder %s93, %s94
    %p103 = scmp.eq.s32.totalorder %s16, 0
    %p104 = por %p102, %p103
    %p105 = scmp.ne.s32.totalorder %s93, %s94
    %p106 = scmp.eq.s32.totalorder %s17, 3
    %p107 = por %p105, %p106
    %p109 = scmp.ne.s32.totalorder %s94, %s108
    %p110 = scmp.eq.s32.totalorder %s17, 0
    %p111 = por %p109, %p110
    %s112 = ssub.s32 %s18, %s30
    %s113 = ssub.s32 %s19, %s26
    %s114 = sor.u32 %s112, %s113
    %p115 = scmp.eq.s32.totalorder %s114, 0
    %s117 = sadd.s32 %s116, 1
    %s118 = scalar_select %p115, %s116, %s117
    %p121 = pneg %p115
    %p122 = scmp.eq.s32.totalorder %s11, 3
    %p123 = por %p121, %p122
    %p124 = scmp.ne.s32.totalorder %s116, %s119
    %p125 = scmp.eq.s32.totalorder %s11, 0
    %p126 = por %p124, %p125
    %p127 = scmp.ne.s32.totalorder %s116, %s119
    %p128 = scmp.eq.s32.totalorder %s16, 3
    %p129 = por %p127, %p128
    %p130 = scmp.ne.s32.totalorder %s119, %s120
    %p131 = scmp.eq.s32.totalorder %s16, 0
    %p132 = por %p130, %p131
    %p133 = scmp.ne.s32.totalorder %s119, %s120
    %p134 = scmp.eq.s32.totalorder %s17, 3
    %p135 = por %p133, %p134
    %p137 = scmp.ne.s32.totalorder %s120, %s136
    %p138 = scmp.eq.s32.totalorder %s17, 0
    %p139 = por %p137, %p138
    %s140 = ssub.s32 %s18, %s30
    %s141 = ssub.s32 %s19, %s26
    %s142 = sor.u32 %s140, %s141
    %p143 = scmp.eq.s32.totalorder %s142, 0
    %s145 = sadd.s32 %s144, 1
    %s146 = scalar_select %p143, %s144, %s145
    %p149 = pneg %p143
    %p150 = scmp.eq.s32.totalorder %s11, 3
    %p151 = por %p149, %p150
    %p152 = scmp.ne.s32.totalorder %s144, %s147
    %p153 = scmp.eq.s32.totalorder %s11, 0
    %p154 = por %p152, %p153
    %p155 = scmp.ne.s32.totalorder %s144, %s147
    %p156 = scmp.eq.s32.totalorder %s16, 3
    %p157 = por %p155, %p156
    %p158 = scmp.ne.s32.totalorder %s147, %s148
    %p159 = scmp.eq.s32.totalorder %s16, 0
    %p160 = por %p158, %p159
    %p161 = scmp.ne.s32.totalorder %s147, %s148
    %p162 = scmp.eq.s32.totalorder %s17, 3
    %p163 = por %p161, %p162
    %p165 = scmp.ne.s32.totalorder %s148, %s164
    %p166 = scmp.eq.s32.totalorder %s17, 0
    %p167 = por %p165, %p166
    %p168 = scmp.le.s32.totalorder 1, %s11
    %p169 = scmp.lt.s32.totalorder %s11, 5
    %p170 = pnand %p168, %p169
    %p171 = pneg %p170
    // Predicated region
    $region9: #{down_block_forward.8} parent=5 // pred_check
      _
    $region10: #{down_block_forward.8} parent=5 // pred_check_branch
      %173 = sbr.rel (%p170) target = $region12
    $region11: #{down_block_forward.8} parent=5 // pred_region
      %s174 = ssub.s32 %s11, 1
      // Predicated region
      $region13: #{down_block_forward.8} parent=11 // pred_check
        %p175 = pneg %p104
      $region14: #{down_block_forward.8} parent=11 // pred_check_branch
        %177 = sbr.rel (%p175) target = $region16
      $region15: #{down_block_forward.8} parent=11 // pred_region
        _
      $region16: #{down_block_forward.8} parent=11 // pred_fallthru
        _
    $region12: #{down_block_forward.8} parent=5 // pred_fallthru
      _
    %p178 = scmp.lt.s32.totalorder %s11, 4
    // Predicated region
    $region17: #{down_block_forward.8} parent=5 // pred_check
      %p179 = pneg %p178
    $region18: #{down_block_forward.8} parent=5 // pred_check_branch
      %181 = sbr.rel (%p179) target = $region20
    $region19: #{down_block_forward.8} parent=5 // pred_region
      // Predicated region
      $region21: #{down_block_forward.8} parent=19 // pred_check
        %p182 = pneg %p45
      $region22: #{down_block_forward.8} parent=19 // pred_check_branch
        %184 = sbr.rel (%p182) target = $region24
      $region23: #{down_block_forward.8} parent=19 // pred_region
        %s185 = smul.u32 4, %s19
        %s186 = ssub.s32 9, %s185
        %p187 = scmp.lt.s32.totalorder %s186, 4
        %s188 = scalar_select %p187, %s186, 4
        %s189 = smul.u32 64, %s188
        %s190 = smul.u32 %s189, 2
        %s191 = smul.u32 %s190, 2
        %s192 = smul.u32 %s191, 2
        %p193 = scmp.lt.s32.totalorder %s18, 1
        %s194 = scalar_select %p193, %s18, 1
        %p195 = scmp.lt.s32.totalorder %s185, 8
        %s196 = scalar_select %p195, %s185, 8
        %s197 = smul.addr %s196, 8
        %s198 = smul.addr %s194, 72
        %s199 = sadd.s32 %s197, %s198
        %s200 = smul.addr %s199, 4
        %s201 = scalar_lea.vmem %s0, %s200
        %s202 = smul.u32 4, %s19
        %s203 = ssub.s32 9, %s202
        %p204 = scmp.lt.s32.totalorder %s203, 4
        %s205 = scalar_select %p204, %s203, 4
        %s206 = smul.u32 64, %s205
        %s207 = smul.u32 %s206, 2
        %s208 = smul.u32 %s207, 2
        %s209 = smul.u32 %s208, 2
      $region24: #{down_block_forward.8} parent=19 // pred_fallthru
        _
      // Predicated region
      $region25: #{down_block_forward.8} parent=19 // pred_check
        %p210 = pneg %p77
      $region26: #{down_block_forward.8} parent=19 // pred_check_branch
        %212 = sbr.rel (%p210) target = $region28
      $region27: #{down_block_forward.8} parent=19 // pred_region
        %s213 = smul.u32 %s19, 4
        %s214 = sadd.s32 %s213, 4
        %p215 = scmp.lt.s32.totalorder %s18, 1
        %s216 = scalar_select %p215, %s18, 1
        %p217 = scmp.lt.s32.totalorder %s214, 8
        %s218 = scalar_select %p217, %s214, 8
        %s219 = smul.addr %s218, 8
        %s220 = smul.addr %s216, 72
        %s221 = sadd.s32 %s219, %s220
        %s222 = smul.addr %s221, 4
        %s223 = scalar_lea.vmem %s1, %s222
        %s224 = smul.u32 %s19, 4
        %s225 = sadd.s32 %s224, 4
      $region28: #{down_block_forward.8} parent=19 // pred_fallthru
        _
    $region20: #{down_block_forward.8} parent=5 // pred_fallthru
      _
    %p226 = scmp.le.s32.totalorder 1, %s11
    %p227 = scmp.lt.s32.totalorder %s11, 5
    %p228 = pnand %p226, %p227
    %p229 = pneg %p228
    // Predicated region
    $region29: #{down_block_forward.8} parent=5 // pred_check
      _
    $region30: #{down_block_forward.8} parent=5 // pred_check_branch
      %231 = sbr.rel (%p228) target = $region32
    $region31: #{down_block_forward.8} parent=5 // pred_region
      %s232 = ssub.s32 %s11, 1
      %s233 = smul.u32 4, %s21
      %s234 = ssub.s32 9, %s233
      %p235 = scmp.lt.s32.totalorder %s234, 4
      %s236 = scalar_select %p235, %s234, 4
      %s237 = smul.u32 64, %s236
      %s238 = smul.u32 %s237, 2
      %s239 = smul.u32 %s238, 2
      %s240 = smul.u32 %s239, 2
      %p241 = scmp.lt.s32.totalorder %s20, 1
      %s242 = scalar_select %p241, %s20, 1
      %p243 = scmp.lt.s32.totalorder %s233, 8
      %s244 = scalar_select %p243, %s233, 8
      %s245 = smul.addr %s244, 8
      %s246 = smul.addr %s242, 72
      %s247 = sadd.s32 %s245, %s246
      %s248 = smul.addr %s247, 4
      %s249 = scalar_lea.vmem %s0, %s248
      %p250 = pneg %p51
      %p251 = pneg %p48
      %s252 = smul.u32 %s21, 4
      %s253 = sadd.s32 %s252, 4
      %p254 = scmp.lt.s32.totalorder %s20, 1
      %s255 = scalar_select %p254, %s20, 1
      %p256 = scmp.lt.s32.totalorder %s253, 8
      %s257 = scalar_select %p256, %s253, 8
      %s258 = smul.addr %s257, 8
      %s259 = smul.addr %s255, 72
      %s260 = sadd.s32 %s258, %s259
      %s261 = smul.addr %s260, 4
      %s262 = scalar_lea.vmem %s1, %s261
      %p263 = pneg %p83
      %p264 = pneg %p80
      %p265 = pneg %p104
      %p266 = pneg %p101
      %p267 = pneg %p132
      %p268 = pneg %p129
      %s269 = smul.u32 4, %s21
      %p270 = scmp.lt.s32.totalorder %s20, 1
      %s271 = scalar_select %p270, %s20, 1
      %p272 = scmp.lt.s32.totalorder %s269, 7
      %s273 = scalar_select %p272, %s269, 7
      %s274 = smul.addr %s271, 8
      %s275 = sadd.s32 %s273, %s274
      %s276 = smul.addr %s275, 4
      %s277 = scalar_lea.vmem %s3, %s276
      %p278 = pneg %p160
      %p279 = pneg %p157
      %p280 = scmp.lt.s32.totalorder %s20, 1
      %s281 = scalar_select %p280, %s20, 1
      %p282 = scmp.lt.s32.totalorder %s21, 1
      %s283 = scalar_select %p282, %s21, 1
      %s284 = smul.addr %s281, 2
      %s285 = sadd.s32 %s283, %s284
      %s286 = smul.addr %s285, 8
      %s287 = scalar_lea.vmem %s4, %s286
      %s288 = smul.u32 4, %s21
      %s289 = ssub.s32 9, %s288
      %p290 = scmp.lt.s32.totalorder %s289, 4
      %s291 = scalar_select %p290, %s289, 4
      %s292 = smul.u32 64, %s291
      %s293 = smul.u32 %s292, 2
      %s294 = smul.u32 %s293, 2
      %s295 = smul.u32 %s294, 2
      %p296 = scmp.lt.s32.totalorder %s20, 1
      %s297 = scalar_select %p296, %s20, 1
      %p298 = scmp.lt.s32.totalorder %s288, 8
      %s299 = scalar_select %p298, %s288, 8
      %s300 = smul.addr %s299, 8
      %s301 = smul.addr %s297, 72
      %s302 = sadd.s32 %s300, %s301
      %s303 = smul.addr %s302, 4
      %s304 = scalar_lea.vmem %s0, %s303
      %s305 = smul.u32 4, %s21
      %s306 = ssub.s32 9, %s305
      %p307 = scmp.lt.s32.totalorder %s306, 4
      %s308 = scalar_select %p307, %s306, 4
      %s309 = smul.u32 64, %s308
      %s310 = smul.u32 %s309, 2
      %s311 = smul.u32 %s310, 2
      %s312 = smul.u32 %s311, 2
      %s313 = smul.u32 %s21, 4
      %s314 = sadd.s32 %s313, 4
      %p315 = scmp.lt.s32.totalorder %s20, 1
      %s316 = scalar_select %p315, %s20, 1
      %p317 = scmp.lt.s32.totalorder %s314, 8
      %s318 = scalar_select %p317, %s314, 8
      %s319 = smul.addr %s318, 8
      %s320 = smul.addr %s316, 72
      %s321 = sadd.s32 %s319, %s320
      %s322 = smul.addr %s321, 4
      %s323 = scalar_lea.vmem %s1, %s322
      %s324 = smul.u32 %s21, 4
      %s325 = sadd.s32 %s324, 4
      %s326 = smul.u32 4, %s21
      %p327 = scmp.lt.s32.totalorder %s20, 1
      %s328 = scalar_select %p327, %s20, 1
      %p329 = scmp.lt.s32.totalorder %s326, 7
      %s330 = scalar_select %p329, %s326, 7
      %s331 = smul.addr %s328, 8
      %s332 = sadd.s32 %s330, %s331
      %s333 = smul.addr %s332, 4
      %s334 = scalar_lea.vmem %s3, %s333
      %s335 = smul.u32 4, %s21
      %p336 = scmp.lt.s32.totalorder %s20, 1
      %s337 = scalar_select %p336, %s20, 1
      %p338 = scmp.lt.s32.totalorder %s21, 1
      %s339 = scalar_select %p338, %s21, 1
      %s340 = smul.addr %s337, 2
      %s341 = sadd.s32 %s339, %s340
      %s342 = smul.addr %s341, 8
      %s343 = scalar_lea.vmem %s4, %s342
      %v344 = vld [vmem:[%s2] sm:$0xff]
      %v345 = vld [vmem:[%s2 + $0x8] sm:$0x1]
      %v346 = vld [vmem:[%s304] sm:$0xf]
      %v347 = vld [vmem:[%s304 + $0x20] sm:$0xf]
      %v348 = vld [vmem:[%s304 + $0x40] sm:$0xf]
      %v349 = vld [vmem:[%s304 + $0x60] sm:$0xf]
      %v350 = vunpack.c.l.bf16 %v346
      %v351 = vunpack.c.l.bf16 %v347
      %v352 = vunpack.c.l.bf16 %v348
      %v353 = vunpack.c.l.bf16 %v349
      %v354 = vlaneseq
      %v355 = vshrl.u32 %v354, 7
      %v356 = vsub.s32 0, %v355
      %v357 = vrot.slane %v344, %v356
      %v358 = vmul.f32 %v350, %v357
      %v359 = vmul.f32 %v351, %v357
      %v360 = vmul.f32 %v352, %v357
      %v361 = vmul.f32 %v353, %v357
      %v362 = vadd.f32 %v358, 0.0
      %v363 = vadd.f32 %v359, 0.0
      %v364 = vadd.f32 %v360, 0.0
      %v365 = vadd.f32 %v361, 0.0
      %v366 = vld [vmem:[%s304 + $0x4] sm:$0xf]
      %v367 = vld [vmem:[%s304 + $0x24] sm:$0xf]
      %v368 = vld [vmem:[%s304 + $0x44] sm:$0xf]
      %v369 = vld [vmem:[%s304 + $0x64] sm:$0xf]
      %v370 = vunpack.c.l.bf16 %v366
      %v371 = vunpack.c.l.bf16 %v367
      %v372 = vunpack.c.l.bf16 %v368
      %v373 = vunpack.c.l.bf16 %v369
      %v374 = vlaneseq
      %v375 = vshrl.u32 %v374, 7
      %v376 = vsub.s32 1, %v375
      %v377 = vrot.slane %v344, %v376
      %v378 = vmul.f32 %v370, %v377
      %v379 = vmul.f32 %v371, %v377
      %v380 = vmul.f32 %v372, %v377
      %v381 = vmul.f32 %v373, %v377
      %v382 = vadd.f32 %v362, %v378
      %v383 = vadd.f32 %v363, %v379
      %v384 = vadd.f32 %v364, %v380
      %v385 = vadd.f32 %v365, %v381
      %v386 = vld [vmem:[%s304 + $0x8] sm:$0x1]
      %v387 = vld [vmem:[%s304 + $0x28] sm:$0x1]
      %v388 = vld [vmem:[%s304 + $0x48] sm:$0x1]
      %v389 = vld [vmem:[%s304 + $0x68] sm:$0x1]
      %v390 = vunpack.c.l.bf16 %v386
      %v391 = vunpack.c.l.bf16 %v387
      %v392 = vunpack.c.l.bf16 %v388
      %v393 = vunpack.c.l.bf16 %v389
      %v394 = vlaneseq
      %v395 = vshrl.u32 %v394, 7
      %v396 = vsub.s32 2, %v395
      %v397 = vrot.slane %v344, %v396
      %v398 = vmul.f32 %v350, %v397
      %v399 = vmul.f32 %v390, %v397
      %v400 = vmul.f32 %v351, %v397
      %v401 = vmul.f32 %v391, %v397
      %v402 = vmul.f32 %v352, %v397
      %v403 = vmul.f32 %v392, %v397
      %v404 = vmul.f32 %v353, %v397
      %v405 = vmul.f32 %v393, %v397
      %vm414 = vcmask 1046528
      %v415 = vrot.slane %v398, 1
      %v416 = vrot.slane %v399, 1
      %v417 = vsel %vm414, %v415, %v416
      %v418 = vrot.slane %v400, 1
      %v419 = vrot.slane %v401, 1
      %v420 = vsel %vm414, %v418, %v419
      %v421 = vrot.slane %v402, 1
      %v422 = vrot.slane %v403, 1
      %v423 = vsel %vm414, %v421, %v422
      %v424 = vrot.slane %v404, 1
      %v425 = vrot.slane %v405, 1
      %v426 = vsel %vm414, %v424, %v425
      %v431 = vadd.f32 %v382, %v417
      %v432 = vadd.f32 %v383, %v420
      %v433 = vadd.f32 %v384, %v423
      %v434 = vadd.f32 %v385, %v426
      %s435 = scalar_lea.vmem %s304, 16
      %v436 = vld [vmem:[%s435] sm:$0xf]
      %v437 = vld [vmem:[%s435 + $0x20] sm:$0xf]
      %v438 = vld [vmem:[%s435 + $0x40] sm:$0xf]
      %v439 = vld [vmem:[%s435 + $0x60] sm:$0xf]
      %v440 = vunpack.c.l.bf16 %v436
      %v441 = vunpack.c.l.bf16 %v437
      %v442 = vunpack.c.l.bf16 %v438
      %v443 = vunpack.c.l.bf16 %v439
      %v444 = vlaneseq
      %v445 = vshrl.u32 %v444, 7
      %v446 = vsub.s32 3, %v445
      %v447 = vrot.slane %v344, %v446
      %v448 = vmul.f32 %v440, %v447
      %v449 = vmul.f32 %v441, %v447
      %v450 = vmul.f32 %v442, %v447
      %v451 = vmul.f32 %v443, %v447
      %v452 = vadd.f32 %v431, %v448
      %v453 = vadd.f32 %v432, %v449
      %v454 = vadd.f32 %v433, %v450
      %v455 = vadd.f32 %v434, %v451
      %v456 = vld [vmem:[%s435 + $0x4] sm:$0xf]
      %v457 = vld [vmem:[%s435 + $0x24] sm:$0xf]
      %v458 = vld [vmem:[%s435 + $0x44] sm:$0xf]
      %v459 = vld [vmem:[%s435 + $0x64] sm:$0xf]
      %v460 = vunpack.c.l.bf16 %v456
      %v461 = vunpack.c.l.bf16 %v457
      %v462 = vunpack.c.l.bf16 %v458
      %v463 = vunpack.c.l.bf16 %v459
      %v464 = vlaneseq
      %v465 = vshrl.u32 %v464, 7
      %v466 = vsub.s32 4, %v465
      %v467 = vrot.slane %v344, %v466
      %v468 = vmul.f32 %v460, %v467
      %v469 = vmul.f32 %v461, %v467
      %v470 = vmul.f32 %v462, %v467
      %v471 = vmul.f32 %v463, %v467
      %v472 = vadd.f32 %v452, %v468
      %v473 = vadd.f32 %v453, %v469
      %v474 = vadd.f32 %v454, %v470
      %v475 = vadd.f32 %v455, %v471
      %v476 = vld [vmem:[%s435 + $0x8] sm:$0x1]
      %v477 = vld [vmem:[%s435 + $0x28] sm:$0x1]
      %v478 = vld [vmem:[%s435 + $0x48] sm:$0x1]
      %v479 = vld [vmem:[%s435 + $0x68] sm:$0x1]
      %v480 = vunpack.c.l.bf16 %v476
      %v481 = vunpack.c.l.bf16 %v477
      %v482 = vunpack.c.l.bf16 %v478
      %v483 = vunpack.c.l.bf16 %v479
      %v484 = vlaneseq
      %v485 = vshrl.u32 %v484, 7
      %v486 = vsub.s32 5, %v485
      %v487 = vrot.slane %v344, %v486
      %v488 = vmul.f32 %v440, %v487
      %v489 = vmul.f32 %v480, %v487
      %v490 = vmul.f32 %v441, %v487
      %v491 = vmul.f32 %v481, %v487
      %v492 = vmul.f32 %v442, %v487
      %v493 = vmul.f32 %v482, %v487
      %v494 = vmul.f32 %v443, %v487
      %v495 = vmul.f32 %v483, %v487
      %v504 = vrot.slane %v488, 1
      %v505 = vrot.slane %v489, 1
      %v506 = vsel %vm414, %v504, %v505
      %v507 = vrot.slane %v490, 1
      %v508 = vrot.slane %v491, 1
      %v509 = vsel %vm414, %v507, %v508
      %v510 = vrot.slane %v492, 1
      %v511 = vrot.slane %v493, 1
      %v512 = vsel %vm414, %v510, %v511
      %v513 = vrot.slane %v494, 1
      %v514 = vrot.slane %v495, 1
      %v515 = vsel %vm414, %v513, %v514
      %v520 = vadd.f32 %v472, %v506
      %v521 = vadd.f32 %v473, %v509
      %v522 = vadd.f32 %v474, %v512
      %v523 = vadd.f32 %v475, %v515
      %s524 = scalar_lea.vmem %s304, 32
      %v525 = vld [vmem:[%s524] sm:$0xf]
      %v526 = vld [vmem:[%s524 + $0x20] sm:$0xf]
      %v527 = vld [vmem:[%s524 + $0x40] sm:$0xf]
      %v528 = vld [vmem:[%s323] sm:$0xf]
      %v529 = vunpack.c.l.bf16 %v525
      %v530 = vunpack.c.l.bf16 %v526
      %v531 = vunpack.c.l.bf16 %v527
      %v532 = vunpack.c.l.bf16 %v528
      %v533 = vlaneseq
      %v534 = vshrl.u32 %v533, 7
      %v535 = vsub.s32 6, %v534
      %v536 = vrot.slane %v344, %v535
      %v537 = vmul.f32 %v529, %v536
      %v538 = vmul.f32 %v530, %v536
      %v539 = vmul.f32 %v531, %v536
      %v540 = vmul.f32 %v532, %v536
      %v541 = vadd.f32 %v520, %v537
      %v542 = vadd.f32 %v521, %v538
      %v543 = vadd.f32 %v522, %v539
      %v544 = vadd.f32 %v523, %v540
      %v545 = vld [vmem:[%s524 + $0x4] sm:$0xf]
      %v546 = vld [vmem:[%s524 + $0x24] sm:$0xf]
      %v547 = vld [vmem:[%s524 + $0x44] sm:$0xf]
      %v548 = vld [vmem:[%s323 + $0x4] sm:$0xf]
      %v549 = vunpack.c.l.bf16 %v545
      %v550 = vunpack.c.l.bf16 %v546
      %v551 = vunpack.c.l.bf16 %v547
      %v552 = vunpack.c.l.bf16 %v548
      %v553 = vlaneseq
      %v554 = vshrl.u32 %v553, 7
      %v555 = vsub.s32 7, %v554
      %v556 = vrot.slane %v344, %v555
      %v557 = vmul.f32 %v549, %v556
      %v558 = vmul.f32 %v550, %v556
      %v559 = vmul.f32 %v551, %v556
      %v560 = vmul.f32 %v552, %v556
      %v561 = vadd.f32 %v541, %v557
      %v562 = vadd.f32 %v542, %v558
      %v563 = vadd.f32 %v543, %v559
      %v564 = vadd.f32 %v544, %v560
      %v565 = vld [vmem:[%s524 + $0x8] sm:$0x1]
      %v566 = vld [vmem:[%s524 + $0x28] sm:$0x1]
      %v567 = vld [vmem:[%s524 + $0x48] sm:$0x1]
      %v568 = vld [vmem:[%s323 + $0x8] sm:$0x1]
      %v569 = vunpack.c.l.bf16 %v565
      %v570 = vunpack.c.l.bf16 %v566
      %v571 = vunpack.c.l.bf16 %v567
      %v572 = vunpack.c.l.bf16 %v568
      %v573 = vlaneseq
      %v574 = vshrl.u32 %v573, 7
      %v575 = vsub.s32 0, %v574
      %v576 = vrot.slane %v345, %v575
      %v577 = vmul.f32 %v529, %v576
      %v578 = vmul.f32 %v569, %v576
      %v579 = vmul.f32 %v530, %v576
      %v580 = vmul.f32 %v570, %v576
      %v581 = vmul.f32 %v531, %v576
      %v582 = vmul.f32 %v571, %v576
      %v583 = vmul.f32 %v532, %v576
      %v584 = vmul.f32 %v572, %v576
      %v593 = vrot.slane %v577, 1
      %v594 = vrot.slane %v578, 1
      %v595 = vsel %vm414, %v593, %v594
      %v596 = vrot.slane %v579, 1
      %v597 = vrot.slane %v580, 1
      %v598 = vsel %vm414, %v596, %v597
      %v599 = vrot.slane %v581, 1
      %v600 = vrot.slane %v582, 1
      %v601 = vsel %vm414, %v599, %v600
      %v602 = vrot.slane %v583, 1
      %v603 = vrot.slane %v584, 1
      %v604 = vsel %vm414, %v602, %v603
      %v609 = vadd.f32 %v561, %v595
      %v610 = vadd.f32 %v562, %v598
      %v611 = vadd.f32 %v563, %v601
      %v612 = vadd.f32 %v564, %v604
      %v613 = vpack.c.bf16 %v609, %v609
      %v614 = vpack.c.bf16 %v610, %v610
      %v615 = vpack.c.bf16 %v611, %v611
      %v616 = vpack.c.bf16 %v612, %v612
      %617 = vst [vmem:[%s334] sm:$0xf] %v613
      %618 = vst [vmem:[%s334 + $0x4] sm:$0xf] %v614
      %619 = vst [vmem:[%s334 + $0x8] sm:$0xf] %v615
      %620 = vst [vmem:[%s334 + $0xc] sm:$0xf] %v616
      %v621 = vadd.f32 %v609, %v610
      %v622 = vadd.f32 %v621, %v611
      %v623 = vadd.f32 %v622, %v612
      %v624 = vrot.slane %v623, 4
      %v625 = vadd.f32 %v623, %v624
      %v626 = vrot.slane %v625, 2
      %v627 = vadd.f32 %v625, %v626
      %v628 = vrot.slane %v627, 1
      %v629 = vadd.f32 %v627, %v628
      %v630 = vmul.f32 %v609, %v609
      %v631 = vmul.f32 %v610, %v610
      %v632 = vmul.f32 %v611, %v611
      %v633 = vmul.f32 %v612, %v612
      %v634 = vadd.f32 %v630, %v631
      %v635 = vadd.f32 %v634, %v632
      %v636 = vadd.f32 %v635, %v633
      %v637 = vrot.slane %v636, 4
      %v638 = vadd.f32 %v636, %v637
      %v639 = vrot.slane %v638, 2
      %v640 = vadd.f32 %v638, %v639
      %v641 = vrot.slane %v640, 1
      %v642 = vadd.f32 %v640, %v641
      %vm643 = vcmask 1040384
      %v644 = vsel %vm643, %v629, %v642
      %vm645 = vcmask 1041408
      %v646 = vsel %vm645, %v644, 0.0
      %647 = vst [vmem:[%s343] sm:$0xff] %v646
      %s648 = smul.u32 4, %s21
      %p649 = scmp.lt.s32.totalorder %s20, 1
      %s650 = scalar_select %p649, %s20, 1
      %p651 = scmp.lt.s32.totalorder %s648, 7
      %s652 = scalar_select %p651, %s648, 7
      %s653 = smul.addr %s650, 8
      %s654 = sadd.s32 %s652, %s653
      %s655 = smul.addr %s654, 4
      %s656 = scalar_lea.vmem %s3, %s655
      %p657 = scmp.lt.s32.totalorder %s20, 1
      %s658 = scalar_select %p657, %s20, 1
      %p659 = scmp.lt.s32.totalorder %s21, 1
      %s660 = scalar_select %p659, %s21, 1
      %s661 = smul.addr %s658, 2
      %s662 = sadd.s32 %s660, %s661
      %s663 = smul.addr %s662, 8
      %s664 = scalar_lea.vmem %s4, %s663
      // Predicated region
      $region33: #{down_block_forward.8} parent=31 // pred_check
        %p665 = pneg %p129
      $region34: #{down_block_forward.8} parent=31 // pred_check_branch
        %667 = sbr.rel (%p665) target = $region36
      $region35: #{down_block_forward.8} parent=31 // pred_region
        %s668 = smul.u32 4, %s21
      $region36: #{down_block_forward.8} parent=31 // pred_fallthru
        _
      // Predicated region
      $region37: #{down_block_forward.8} parent=31 // pred_check
        %p669 = pneg %p157
      $region38: #{down_block_forward.8} parent=31 // pred_check_branch
        %671 = sbr.rel (%p669) target = $region40
      $region39: #{down_block_forward.8} parent=31 // pred_region
        _
      $region40: #{down_block_forward.8} parent=31 // pred_fallthru
        _
    $region32: #{down_block_forward.8} parent=5 // pred_fallthru
      _
    %p672 = scmp.le.s32.totalorder 2, %s11
    // Predicated region
    $region41: #{down_block_forward.8} parent=5 // pred_check
      %p673 = pneg %p672
    $region42: #{down_block_forward.8} parent=5 // pred_check_branch
      %675 = sbr.rel (%p673) target = $region44
    $region43: #{down_block_forward.8} parent=5 // pred_region
      %s676 = ssub.s32 %s11, 2
      // Predicated region
      $region45: #{down_block_forward.8} parent=43 // pred_check
        %p677 = pneg %p135
      $region46: #{down_block_forward.8} parent=43 // pred_check_branch
        %679 = sbr.rel (%p677) target = $region48
      $region47: #{down_block_forward.8} parent=43 // pred_region
        %s680 = smul.u32 4, %s23
        %p681 = scmp.lt.s32.totalorder %s22, 1
        %s682 = scalar_select %p681, %s22, 1
        %p683 = scmp.lt.s32.totalorder %s680, 7
        %s684 = scalar_select %p683, %s680, 7
        %s685 = smul.addr %s682, 8
        %s686 = sadd.s32 %s684, %s685
        %s687 = smul.addr %s686, 4
        %s688 = scalar_lea.vmem %s3, %s687
      $region48: #{down_block_forward.8} parent=43 // pred_fallthru
        _
      // Predicated region
      $region49: #{down_block_forward.8} parent=43 // pred_check
        %p689 = pneg %p163
      $region50: #{down_block_forward.8} parent=43 // pred_check_branch
        %691 = sbr.rel (%p689) target = $region52
      $region51: #{down_block_forward.8} parent=43 // pred_region
        %p692 = scmp.lt.s32.totalorder %s22, 1
        %s693 = scalar_select %p692, %s22, 1
        %p694 = scmp.lt.s32.totalorder %s23, 1
        %s695 = scalar_select %p694, %s23, 1
        %s696 = smul.addr %s693, 2
        %s697 = sadd.s32 %s695, %s696
        %s698 = smul.addr %s697, 8
        %s699 = scalar_lea.vmem %s4, %s698
      $region52: #{down_block_forward.8} parent=43 // pred_fallthru
        _
    $region44: #{down_block_forward.8} parent=5 // pred_fallthru
      _
  $region6: #{down_block_forward.8} parent=0 // loop_footer
    %s15 = sadd.s32 1, %s11
  $region7: #{down_block_forward.8} parent=0 // loop_footer_branch
    %10 = sbr.rel target = $region3
  $region8: #{down_block_forward.8} parent=0 // loop_exit
    _

// kernel: down_block_forward.7
$region0: #{down_block_forward.7}
  #allocation0 [shape = 'u32[]', space=smem, size = 0x4, offset = 0x4, fixed_abs, tag = 'smem constant byte address 0x4 - core index']
  #allocation1 [shape = 'u32[144,128]{1,0:T(1,128)}', space=vmem, size = 0x12000, scoped, tag = 'internal scratch']
  %s0 = inlined_call_operand.vmem [shape: bf16[512,128], index: 0, kind: input, shape index: {}]
  %s1 = inlined_call_operand.vmem [shape: bf16[128,128], index: 1, kind: input, shape index: {}]
  %s2 = inlined_call_operand.vmem [shape: bf16[512,128], index: 2, kind: output, shape index: {0}]
  %s3 = inlined_call_operand.vmem [shape: f32[1,8,128], index: 3, kind: output, shape index: {1}]
  %4 = xla_tuple %s2, %s3
  %s5 = sld [smem:[#allocation0]]
  $region26: #{down_block_forward.7} parent=0
    _
  %s7 = ssub.s32 1, %s5
  %s8 = scalar_select 0, %s7, %s5
  // Predicated region
  $region2: #{down_block_forward.7} parent=0 // pred_check
    _
  $region3: #{down_block_forward.7} parent=0 // pred_check_branch
    %10 = sbr.rel (0) target = $region5
  $region4: #{down_block_forward.7} parent=0 // pred_region
    _
  $region5: #{down_block_forward.7} parent=0 // pred_fallthru
    _
  // Predicated region
  $region6: #{down_block_forward.7} parent=0 // pred_check
    _
  $region7: #{down_block_forward.7} parent=0 // pred_check_branch
    %12 = sbr.rel (0) target = $region9
  $region8: #{down_block_forward.7} parent=0 // pred_region
    _
  $region9: #{down_block_forward.7} parent=0 // pred_fallthru
    _
  %v14 = vld [vmem:[%s0] sm:$0xf]
  %v15 = vld [vmem:[%s0 + $0x4] sm:$0xf]
  %v16 = vld [vmem:[%s0 + $0x8] sm:$0xf]
  %v17 = vld [vmem:[%s0 + $0xc] sm:$0xf]
  %v18 = vld [vmem:[%s0 + $0x10] sm:$0xf]
  %v19 = vld [vmem:[%s0 + $0x14] sm:$0xf]
  %v20 = vld [vmem:[%s0 + $0x18] sm:$0xf]
  %v21 = vld [vmem:[%s0 + $0x1c] sm:$0xf]
  %v22 = vld [vmem:[%s0 + $0x20] sm:$0xf]
  %v23 = vld [vmem:[%s0 + $0x24] sm:$0xf]
  %v24 = vld [vmem:[%s0 + $0x28] sm:$0xf]
  %v25 = vld [vmem:[%s0 + $0x2c] sm:$0xf]
  %v26 = vld [vmem:[%s0 + $0x30] sm:$0xf]
  %v27 = vld [vmem:[%s0 + $0x34] sm:$0xf]
  %v28 = vld [vmem:[%s0 + $0x38] sm:$0xf]
  %v29 = vld [vmem:[%s0 + $0x3c] sm:$0xf]
  %v30 = vld [vmem:[%s0 + $0x40] sm:$0xf]
  %v31 = vld [vmem:[%s0 + $0x44] sm:$0xf]
  %v32 = vld [vmem:[%s0 + $0x48] sm:$0xf]
  %v33 = vld [vmem:[%s0 + $0x4c] sm:$0xf]
  %v34 = vld [vmem:[%s0 + $0x50] sm:$0xf]
  %v35 = vld [vmem:[%s0 + $0x54] sm:$0xf]
  %v36 = vld [vmem:[%s0 + $0x58] sm:$0xf]
  %v37 = vld [vmem:[%s0 + $0x5c] sm:$0xf]
  %v38 = vld [vmem:[%s0 + $0x60] sm:$0xf]
  %v39 = vld [vmem:[%s0 + $0x64] sm:$0xf]
  %v40 = vld [vmem:[%s0 + $0x68] sm:$0xf]
  %v41 = vld [vmem:[%s0 + $0x6c] sm:$0xf]
  %v42 = vld [vmem:[%s0 + $0x70] sm:$0xf]
  %v43 = vld [vmem:[%s0 + $0x74] sm:$0xf]
  %v44 = vld [vmem:[%s0 + $0x78] sm:$0xf]
  %v45 = vld [vmem:[%s0 + $0x7c] sm:$0xf]
  %v46 = vld [vmem:[%s0 + $0x80] sm:$0xf]
  %v47 = vld [vmem:[%s0 + $0x84] sm:$0xf]
  %v48 = vld [vmem:[%s0 + $0x88] sm:$0xf]
  %v49 = vld [vmem:[%s0 + $0x8c] sm:$0xf]
  %v50 = vld [vmem:[%s0 + $0x90] sm:$0xf]
  %v51 = vld [vmem:[%s0 + $0x94] sm:$0xf]
  %v52 = vld [vmem:[%s0 + $0x98] sm:$0xf]
  %v53 = vld [vmem:[%s0 + $0x9c] sm:$0xf]
  %v54 = vld [vmem:[%s0 + $0xa0] sm:$0xf]
  %v55 = vld [vmem:[%s0 + $0xa4] sm:$0xf]
  %v56 = vld [vmem:[%s0 + $0xa8] sm:$0xf]
  %v57 = vld [vmem:[%s0 + $0xac] sm:$0xf]
  %v58 = vld [vmem:[%s0 + $0xb0] sm:$0xf]
  %v59 = vld [vmem:[%s0 + $0xb4] sm:$0xf]
  %v60 = vld [vmem:[%s0 + $0xb8] sm:$0xf]
  %v61 = vld [vmem:[%s0 + $0xbc] sm:$0xf]
  %v62 = vld [vmem:[%s0 + $0xc0] sm:$0xf]
  %v63 = vld [vmem:[%s0 + $0xc4] sm:$0xf]
  %v64 = vld [vmem:[%s0 + $0xc8] sm:$0xf]
  %v65 = vld [vmem:[%s0 + $0xcc] sm:$0xf]
  %v66 = vld [vmem:[%s0 + $0xd0] sm:$0xf]
  %v67 = vld [vmem:[%s0 + $0xd4] sm:$0xf]
  %v68 = vld [vmem:[%s0 + $0xd8] sm:$0xf]
  %v69 = vld [vmem:[%s0 + $0xdc] sm:$0xf]
  %v70 = vld [vmem:[%s0 + $0xe0] sm:$0xf]
  %v71 = vld [vmem:[%s0 + $0xe4] sm:$0xf]
  %v72 = vld [vmem:[%s0 + $0xe8] sm:$0xf]
  %v73 = vld [vmem:[%s0 + $0xec] sm:$0xf]
  %v74 = vld [vmem:[%s0 + $0xf0] sm:$0xf]
  %v75 = vld [vmem:[%s0 + $0xf4] sm:$0xf]
  %v76 = vld [vmem:[%s0 + $0xf8] sm:$0xf]
  %v77 = vld [vmem:[%s0 + $0xfc] sm:$0xf]
  %v78 = vld [vmem:[%s1] sm:$0xf]
  %v79 = vld [vmem:[%s1 + $0x4] sm:$0xf]
  %v80 = vld [vmem:[%s1 + $0x8] sm:$0xf]
  %v81 = vld [vmem:[%s1 + $0xc] sm:$0xf]
  %v82 = vld [vmem:[%s1 + $0x10] sm:$0xf]
  %v83 = vld [vmem:[%s1 + $0x14] sm:$0xf]
  %v84 = vld [vmem:[%s1 + $0x18] sm:$0xf]
  %v85 = vld [vmem:[%s1 + $0x1c] sm:$0xf]
  %v86 = vld [vmem:[%s1 + $0x20] sm:$0xf]
  %v87 = vld [vmem:[%s1 + $0x24] sm:$0xf]
  %v88 = vld [vmem:[%s1 + $0x28] sm:$0xf]
  %v89 = vld [vmem:[%s1 + $0x2c] sm:$0xf]
  %v90 = vld [vmem:[%s1 + $0x30] sm:$0xf]
  %v91 = vld [vmem:[%s1 + $0x34] sm:$0xf]
  %v92 = vld [vmem:[%s1 + $0x38] sm:$0xf]
  %v93 = vld [vmem:[%s1 + $0x3c] sm:$0xf]
  %v158 = vunpack.c.l.b16 %v14
  %v159 = vunpack.c.l.b16 %v15
  %v160 = vunpack.c.l.b16 %v16
  %v161 = vunpack.c.l.b16 %v17
  %v162 = vunpack.c.l.b16 %v18
  %v163 = vunpack.c.l.b16 %v19
  %v164 = vunpack.c.l.b16 %v20
  %v165 = vunpack.c.l.b16 %v21
  %v166 = vunpack.c.l.b16 %v22
  %v167 = vunpack.c.l.b16 %v23
  %v168 = vunpack.c.l.b16 %v24
  %v169 = vunpack.c.l.b16 %v25
  %v170 = vunpack.c.l.b16 %v26
  %v171 = vunpack.c.l.b16 %v27
  %v172 = vunpack.c.l.b16 %v28
  %v173 = vunpack.c.l.b16 %v29
  %v174 = vunpack.c.l.b16 %v30
  %v175 = vunpack.c.l.b16 %v31
  %v176 = vunpack.c.l.b16 %v32
  %v177 = vunpack.c.l.b16 %v33
  %v178 = vunpack.c.l.b16 %v34
  %v179 = vunpack.c.l.b16 %v35
  %v180 = vunpack.c.l.b16 %v36
  %v181 = vunpack.c.l.b16 %v37
  %v182 = vunpack.c.l.b16 %v38
  %v183 = vunpack.c.l.b16 %v39
  %v184 = vunpack.c.l.b16 %v40
  %v185 = vunpack.c.l.b16 %v41
  %v186 = vunpack.c.l.b16 %v42
  %v187 = vunpack.c.l.b16 %v43
  %v188 = vunpack.c.l.b16 %v44
  %v189 = vunpack.c.l.b16 %v45
  %v190 = vunpack.c.l.b16 %v46
  %v191 = vunpack.c.l.b16 %v47
  %v192 = vunpack.c.l.b16 %v48
  %v193 = vunpack.c.l.b16 %v49
  %v194 = vunpack.c.l.b16 %v50
  %v195 = vunpack.c.l.b16 %v51
  %v196 = vunpack.c.l.b16 %v52
  %v197 = vunpack.c.l.b16 %v53
  %v198 = vunpack.c.l.b16 %v54
  %v199 = vunpack.c.l.b16 %v55
  %v200 = vunpack.c.l.b16 %v56
  %v201 = vunpack.c.l.b16 %v57
  %v202 = vunpack.c.l.b16 %v58
  %v203 = vunpack.c.l.b16 %v59
  %v204 = vunpack.c.l.b16 %v60
  %v205 = vunpack.c.l.b16 %v61
  %v206 = vunpack.c.l.b16 %v62
  %v207 = vunpack.c.l.b16 %v63
  %v208 = vunpack.c.l.b16 %v64
  %v209 = vunpack.c.l.b16 %v65
  %v210 = vunpack.c.l.b16 %v66
  %v211 = vunpack.c.l.b16 %v67
  %v212 = vunpack.c.l.b16 %v68
  %v213 = vunpack.c.l.b16 %v69
  %v214 = vunpack.c.l.b16 %v70
  %v215 = vunpack.c.l.b16 %v71
  %v216 = vunpack.c.l.b16 %v72
  %v217 = vunpack.c.l.b16 %v73
  %v218 = vunpack.c.l.b16 %v74
  %v219 = vunpack.c.l.b16 %v75
  %v220 = vunpack.c.l.b16 %v76
  %v221 = vunpack.c.l.b16 %v77
  %v222 = vpack.c.b16 %v159, %v158
  %v223 = vpack.c.b16 %v161, %v160
  %v224 = vpack.c.b16 %v163, %v162
  %v225 = vpack.c.b16 %v165, %v164
  %v226 = vpack.c.b16 %v167, %v166
  %v227 = vpack.c.b16 %v169, %v168
  %v228 = vpack.c.b16 %v171, %v170
  %v229 = vpack.c.b16 %v173, %v172
  %v230 = vpack.c.b16 %v175, %v174
  %v231 = vpack.c.b16 %v177, %v176
  %v232 = vpack.c.b16 %v179, %v178
  %v233 = vpack.c.b16 %v181, %v180
  %v234 = vpack.c.b16 %v183, %v182
  %v235 = vpack.c.b16 %v185, %v184
  %v236 = vpack.c.b16 %v187, %v186
  %v237 = vpack.c.b16 %v189, %v188
  %v238 = vpack.c.b16 %v191, %v190
  %v239 = vpack.c.b16 %v193, %v192
  %v240 = vpack.c.b16 %v195, %v194
  %v241 = vpack.c.b16 %v197, %v196
  %v242 = vpack.c.b16 %v199, %v198
  %v243 = vpack.c.b16 %v201, %v200
  %v244 = vpack.c.b16 %v203, %v202
  %v245 = vpack.c.b16 %v205, %v204
  %v246 = vpack.c.b16 %v207, %v206
  %v247 = vpack.c.b16 %v209, %v208
  %v248 = vpack.c.b16 %v211, %v210
  %v249 = vpack.c.b16 %v213, %v212
  %v250 = vpack.c.b16 %v215, %v214
  %v251 = vpack.c.b16 %v217, %v216
  %v252 = vpack.c.b16 %v219, %v218
  %v253 = vpack.c.b16 %v221, %v220
  %v302 = vunpack.c.l.b16 %v78
  %v303 = vunpack.c.l.b16 %v79
  %v304 = vunpack.c.l.b16 %v80
  %v305 = vunpack.c.l.b16 %v81
  %v306 = vunpack.c.l.b16 %v82
  %v307 = vunpack.c.l.b16 %v83
  %v308 = vunpack.c.l.b16 %v84
  %v309 = vunpack.c.l.b16 %v85
  %v310 = vunpack.c.l.b16 %v86
  %v311 = vunpack.c.l.b16 %v87
  %v312 = vunpack.c.l.b16 %v88
  %v313 = vunpack.c.l.b16 %v89
  %v314 = vunpack.c.l.b16 %v90
  %v315 = vunpack.c.l.b16 %v91
  %v316 = vunpack.c.l.b16 %v92
  %v317 = vunpack.c.l.b16 %v93
  %v318 = vpack.c.b16 %v303, %v302
  %v319 = vpack.c.b16 %v305, %v304
  %v320 = vpack.c.b16 %v307, %v306
  %v321 = vpack.c.b16 %v309, %v308
  %v322 = vpack.c.b16 %v311, %v310
  %v323 = vpack.c.b16 %v313, %v312
  %v324 = vpack.c.b16 %v315, %v314
  %v325 = vpack.c.b16 %v317, %v316
  %334 = vmatprep.subr.bf16.mxu0 0
  %335 = vmatpush1.bf16.msra.mxu0 %v325
  %336 = vmatprep.subr.bf16.mxu0 0
  %337 = vmatpush1.bf16.msra.mxu0 %v324
  %338 = vmatprep.subr.bf16.mxu0 0
  %339 = vmatpush1.bf16.msra.mxu0 %v323
  %340 = vmatprep.subr.bf16.mxu0 0
  %341 = vmatpush1.bf16.msra.mxu0 %v322
  %342 = vmatprep.subr.bf16.mxu0 0
  %343 = vmatpush1.bf16.msra.mxu0 %v321
  %344 = vmatprep.subr.bf16.mxu0 0
  %345 = vmatpush1.bf16.msra.mxu0 %v320
  %346 = vmatprep.subr.bf16.mxu0 0
  %347 = vmatpush1.bf16.msra.mxu0 %v319
  %348 = vmatprep.subr.bf16.mxu0 0
  %349 = vmatpush1.bf16.msra.mxu0 %v318
  %350 = vmatprep.subr.bf16.mxu0 0
  %351 = vmatpush2.bf16.msra.mxu0 0
  %352 = vmatprep.subr.bf16.mxu0 0
  %353 = vmatpush2.bf16.msra.mxu0 0
  %354 = vmatprep.subr.bf16.mxu0 0
  %355 = vmatpush2.bf16.msra.mxu0 0
  %356 = vmatprep.subr.bf16.mxu0 0
  %357 = vmatpush2.bf16.msra.mxu0 0
  %358 = vmatprep.subr.bf16.mxu0 0
  %359 = vmatpush2.bf16.msra.mxu0 0
  %360 = vmatprep.subr.bf16.mxu0 0
  %361 = vmatpush2.bf16.msra.mxu0 0
  %362 = vmatprep.subr.bf16.mxu0 0
  %363 = vmatpush2.bf16.msra.mxu0 0
  %364 = vmatprep.subr.bf16.mxu0 0
  %365 = vmatpush2.bf16.msra.mxu0 0
  %366 = vmatprep.mubr.bf16.mxu0 0
  %367 = vmatmul.mubr.bf16.gmra.mxu0 %v222
  %v368 = vpop.f32.mrf.mxu0
  %v369 = vadd.f32 0.0, %v368
  %v370 = vpop.f32.mrf.mxu0
  %v371 = vpop.f32.mrf.mxu0
  %v372 = vadd.f32 0.0, %v371
  %v373 = vpop.f32.mrf.mxu0
  %374 = vmatprep.mubr.bf16.mxu0 0
  %375 = vmatmul.mubr.bf16.gmra.mxu0 %v223
  %v376 = vpop.f32.mrf.mxu0
  %v377 = vadd.f32 0.0, %v376
  %v378 = vpop.f32.mrf.mxu0
  %v379 = vpop.f32.mrf.mxu0
  %v380 = vadd.f32 0.0, %v379
  %v381 = vpop.f32.mrf.mxu0
  %382 = vmatprep.mubr.bf16.mxu0 0
  %383 = vmatmul.mubr.bf16.gmra.mxu0 %v224
  %v384 = vpop.f32.mrf.mxu0
  %v385 = vadd.f32 0.0, %v384
  %v386 = vpop.f32.mrf.mxu0
  %v387 = vpop.f32.mrf.mxu0
  %v388 = vadd.f32 0.0, %v387
  %v389 = vpop.f32.mrf.mxu0
  %390 = vmatprep.mubr.bf16.mxu0 0
  %391 = vmatmul.mubr.bf16.gmra.mxu0 %v225
  %v392 = vpop.f32.mrf.mxu0
  %v393 = vadd.f32 0.0, %v392
  %v394 = vpop.f32.mrf.mxu0
  %v395 = vpop.f32.mrf.mxu0
  %v396 = vadd.f32 0.0, %v395
  %v397 = vpop.f32.mrf.mxu0
  %398 = vmatprep.mubr.bf16.mxu0 0
  %399 = vmatmul.mubr.bf16.gmra.mxu0 %v226
  %v400 = vpop.f32.mrf.mxu0
  %v401 = vadd.f32 0.0, %v400
  %v402 = vpop.f32.mrf.mxu0
  %v403 = vpop.f32.mrf.mxu0
  %v404 = vadd.f32 0.0, %v403
  %v405 = vpop.f32.mrf.mxu0
  %406 = vmatprep.mubr.bf16.mxu0 0
  %407 = vmatmul.mubr.bf16.gmra.mxu0 %v227
  %v408 = vpop.f32.mrf.mxu0
  %v409 = vadd.f32 0.0, %v408
  %v410 = vpop.f32.mrf.mxu0
  %v411 = vpop.f32.mrf.mxu0
  %v412 = vadd.f32 0.0, %v411
  %v413 = vpop.f32.mrf.mxu0
  %414 = vmatprep.mubr.bf16.mxu0 0
  %415 = vmatmul.mubr.bf16.gmra.mxu0 %v228
  %v416 = vpop.f32.mrf.mxu0
  %v417 = vadd.f32 0.0, %v416
  %v418 = vpop.f32.mrf.mxu0
  %v419 = vpop.f32.mrf.mxu0
  %v420 = vadd.f32 0.0, %v419
  %v421 = vpop.f32.mrf.mxu0
  %422 = vmatprep.mubr.bf16.mxu0 0
  %423 = vmatmul.mubr.bf16.gmra.mxu0 %v229
  %v424 = vpop.f32.mrf.mxu0
  %v425 = vadd.f32 0.0, %v424
  %v426 = vpop.f32.mrf.mxu0
  %v427 = vpop.f32.mrf.mxu0
  %v428 = vadd.f32 0.0, %v427
  %v429 = vpop.f32.mrf.mxu0
  %430 = vmatprep.mubr.bf16.mxu0 0
  %431 = vmatmul.mubr.bf16.gmra.mxu0 %v230
  %v432 = vpop.f32.mrf.mxu0
  %v433 = vadd.f32 0.0, %v432
  %v434 = vpop.f32.mrf.mxu0
  %v435 = vpop.f32.mrf.mxu0
  %v436 = vadd.f32 0.0, %v435
  %v437 = vpop.f32.mrf.mxu0
  %438 = vmatprep.mubr.bf16.mxu0 0
  %439 = vmatmul.mubr.bf16.gmra.mxu0 %v231
  %v440 = vpop.f32.mrf.mxu0
  %v441 = vadd.f32 0.0, %v440
  %v442 = vpop.f32.mrf.mxu0
  %v443 = vpop.f32.mrf.mxu0
  %v444 = vadd.f32 0.0, %v443
  %v445 = vpop.f32.mrf.mxu0
  %446 = vmatprep.mubr.bf16.mxu0 0
  %447 = vmatmul.mubr.bf16.gmra.mxu0 %v232
  %v448 = vpop.f32.mrf.mxu0
  %v449 = vadd.f32 0.0, %v448
  %v450 = vpop.f32.mrf.mxu0
  %v451 = vpop.f32.mrf.mxu0
  %v452 = vadd.f32 0.0, %v451
  %v453 = vpop.f32.mrf.mxu0
  %454 = vmatprep.mubr.bf16.mxu0 0
  %455 = vmatmul.mubr.bf16.gmra.mxu0 %v233
  %v456 = vpop.f32.mrf.mxu0
  %v457 = vadd.f32 0.0, %v456
  %v458 = vpop.f32.mrf.mxu0
  %v459 = vpop.f32.mrf.mxu0
  %v460 = vadd.f32 0.0, %v459
  %v461 = vpop.f32.mrf.mxu0
  %462 = vmatprep.mubr.bf16.mxu0 0
  %463 = vmatmul.mubr.bf16.gmra.mxu0 %v234
  %v464 = vpop.f32.mrf.mxu0
  %v465 = vadd.f32 0.0, %v464
  %v466 = vpop.f32.mrf.mxu0
  %v467 = vpop.f32.mrf.mxu0
  %v468 = vadd.f32 0.0, %v467
  %v469 = vpop.f32.mrf.mxu0
  %470 = vmatprep.mubr.bf16.mxu0 0
  %471 = vmatmul.mubr.bf16.gmra.mxu0 %v235
  %v472 = vpop.f32.mrf.mxu0
  %v473 = vadd.f32 0.0, %v472
  %v474 = vpop.f32.mrf.mxu0
  %v475 = vpop.f32.mrf.mxu0
  %v476 = vadd.f32 0.0, %v475
  %v477 = vpop.f32.mrf.mxu0
  %478 = vmatprep.mubr.bf16.mxu0 0
  %479 = vmatmul.mubr.bf16.gmra.mxu0 %v236
  %v480 = vpop.f32.mrf.mxu0
  %v481 = vadd.f32 0.0, %v480
  %v482 = vpop.f32.mrf.mxu0
  %v483 = vpop.f32.mrf.mxu0
  %v484 = vadd.f32 0.0, %v483
  %v485 = vpop.f32.mrf.mxu0
  %486 = vmatprep.mubr.bf16.mxu0 0
  %487 = vmatmul.mubr.bf16.gmra.mxu0 %v237
  %v488 = vpop.f32.mrf.mxu0
  %v489 = vadd.f32 0.0, %v488
  %v490 = vpop.f32.mrf.mxu0
  %v491 = vpop.f32.mrf.mxu0
  %v492 = vadd.f32 0.0, %v491
  %v493 = vpop.f32.mrf.mxu0
  %494 = vmatprep.mubr.bf16.mxu0 0
  %495 = vmatmul.mubr.bf16.gmra.mxu0 %v238
  %v496 = vpop.f32.mrf.mxu0
  %v497 = vadd.f32 0.0, %v496
  %v498 = vpop.f32.mrf.mxu0
  %v499 = vpop.f32.mrf.mxu0
  %v500 = vadd.f32 0.0, %v499
  %v501 = vpop.f32.mrf.mxu0
  %502 = vmatprep.mubr.bf16.mxu0 0
  %503 = vmatmul.mubr.bf16.gmra.mxu0 %v239
  %v504 = vpop.f32.mrf.mxu0
  %v505 = vadd.f32 0.0, %v504
  %v506 = vpop.f32.mrf.mxu0
  %v507 = vpop.f32.mrf.mxu0
  %v508 = vadd.f32 0.0, %v507
  %v509 = vpop.f32.mrf.mxu0
  %510 = vmatprep.mubr.bf16.mxu0 0
  %511 = vmatmul.mubr.bf16.gmra.mxu0 %v240
  %v512 = vpop.f32.mrf.mxu0
  %v513 = vadd.f32 0.0, %v512
  %v514 = vpop.f32.mrf.mxu0
  %v515 = vpop.f32.mrf.mxu0
  %v516 = vadd.f32 0.0, %v515
  %v517 = vpop.f32.mrf.mxu0
  %518 = vmatprep.mubr.bf16.mxu0 0
  %519 = vmatmul.mubr.bf16.gmra.mxu0 %v241
  %v520 = vpop.f32.mrf.mxu0
  %v521 = vadd.f32 0.0, %v520
  %v522 = vpop.f32.mrf.mxu0
  %v523 = vpop.f32.mrf.mxu0
  %v524 = vadd.f32 0.0, %v523
  %v525 = vpop.f32.mrf.mxu0
  %526 = vmatprep.mubr.bf16.mxu0 0
  %527 = vmatmul.mubr.bf16.gmra.mxu0 %v242
  %v528 = vpop.f32.mrf.mxu0
  %v529 = vadd.f32 0.0, %v528
  %v530 = vpop.f32.mrf.mxu0
  %v531 = vpop.f32.mrf.mxu0
  %v532 = vadd.f32 0.0, %v531
  %v533 = vpop.f32.mrf.mxu0
  %534 = vmatprep.mubr.bf16.mxu0 0
  %535 = vmatmul.mubr.bf16.gmra.mxu0 %v243
  %v536 = vpop.f32.mrf.mxu0
  %v537 = vadd.f32 0.0, %v536
  %v538 = vpop.f32.mrf.mxu0
  %v539 = vpop.f32.mrf.mxu0
  %v540 = vadd.f32 0.0, %v539
  %v541 = vpop.f32.mrf.mxu0
  %542 = vmatprep.mubr.bf16.mxu0 0
  %543 = vmatmul.mubr.bf16.gmra.mxu0 %v244
  %v544 = vpop.f32.mrf.mxu0
  %v545 = vadd.f32 0.0, %v544
  %v546 = vpop.f32.mrf.mxu0
  %v547 = vpop.f32.mrf.mxu0
  %v548 = vadd.f32 0.0, %v547
  %v549 = vpop.f32.mrf.mxu0
  %550 = vmatprep.mubr.bf16.mxu0 0
  %551 = vmatmul.mubr.bf16.gmra.mxu0 %v245
  %v552 = vpop.f32.mrf.mxu0
  %v553 = vadd.f32 0.0, %v552
  %v554 = vpop.f32.mrf.mxu0
  %v555 = vpop.f32.mrf.mxu0
  %v556 = vadd.f32 0.0, %v555
  %v557 = vpop.f32.mrf.mxu0
  %558 = vmatprep.mubr.bf16.mxu0 0
  %559 = vmatmul.mubr.bf16.gmra.mxu0 %v246
  %v560 = vpop.f32.mrf.mxu0
  %v561 = vadd.f32 0.0, %v560
  %v562 = vpop.f32.mrf.mxu0
  %v563 = vpop.f32.mrf.mxu0
  %v564 = vadd.f32 0.0, %v563
  %v565 = vpop.f32.mrf.mxu0
  %566 = vmatprep.mubr.bf16.mxu0 0
  %567 = vmatmul.mubr.bf16.gmra.mxu0 %v247
  %v568 = vpop.f32.mrf.mxu0
  %v569 = vadd.f32 0.0, %v568
  %v570 = vpop.f32.mrf.mxu0
  %v571 = vpop.f32.mrf.mxu0
  %v572 = vadd.f32 0.0, %v571
  %v573 = vpop.f32.mrf.mxu0
  %574 = vmatprep.mubr.bf16.mxu0 0
  %575 = vmatmul.mubr.bf16.gmra.mxu0 %v248
  %v576 = vpop.f32.mrf.mxu0
  %v577 = vadd.f32 0.0, %v576
  %v578 = vpop.f32.mrf.mxu0
  %v579 = vpop.f32.mrf.mxu0
  %v580 = vadd.f32 0.0, %v579
  %v581 = vpop.f32.mrf.mxu0
  %582 = vmatprep.mubr.bf16.mxu0 0
  %583 = vmatmul.mubr.bf16.gmra.mxu0 %v249
  %v584 = vpop.f32.mrf.mxu0
  %v585 = vadd.f32 0.0, %v584
  %v586 = vpop.f32.mrf.mxu0
  %v587 = vpop.f32.mrf.mxu0
  %v588 = vadd.f32 0.0, %v587
  %v589 = vpop.f32.mrf.mxu0
  %590 = vmatprep.mubr.bf16.mxu0 0
  %591 = vmatmul.mubr.bf16.gmra.mxu0 %v250
  %v592 = vpop.f32.mrf.mxu0
  %v593 = vadd.f32 0.0, %v592
  %v594 = vpop.f32.mrf.mxu0
  %v595 = vpop.f32.mrf.mxu0
  %v596 = vadd.f32 0.0, %v595
  %v597 = vpop.f32.mrf.mxu0
  %598 = vmatprep.mubr.bf16.mxu0 0
  %599 = vmatmul.mubr.bf16.gmra.mxu0 %v251
  %v600 = vpop.f32.mrf.mxu0
  %v601 = vadd.f32 0.0, %v600
  %v602 = vpop.f32.mrf.mxu0
  %v603 = vpop.f32.mrf.mxu0
  %v604 = vadd.f32 0.0, %v603
  %v605 = vpop.f32.mrf.mxu0
  %606 = vmatprep.mubr.bf16.mxu0 0
  %607 = vmatmul.mubr.bf16.gmra.mxu0 %v252
  %v608 = vpop.f32.mrf.mxu0
  %v609 = vadd.f32 0.0, %v608
  %v610 = vpop.f32.mrf.mxu0
  %v611 = vpop.f32.mrf.mxu0
  %v612 = vadd.f32 0.0, %v611
  %v613 = vpop.f32.mrf.mxu0
  %614 = vmatprep.mubr.bf16.mxu0 0
  %615 = vmatmul.mubr.bf16.gmra.mxu0 %v253
  %v616 = vpop.f32.mrf.mxu0
  %v617 = vadd.f32 0.0, %v616
  %v618 = vpop.f32.mrf.mxu0
  %v619 = vpop.f32.mrf.mxu0
  %v620 = vadd.f32 0.0, %v619
  %v621 = vpop.f32.mrf.mxu0
  %622 = vdwg.mxu0
  %v623 = vpack.c.bf16 %v372, %v369
  %v624 = vpack.c.bf16 %v380, %v377
  %v625 = vpack.c.bf16 %v388, %v385
  %v626 = vpack.c.bf16 %v396, %v393
  %v627 = vpack.c.bf16 %v404, %v401
  %v628 = vpack.c.bf16 %v412, %v409
  %v629 = vpack.c.bf16 %v420, %v417
  %v630 = vpack.c.bf16 %v428, %v425
  %v631 = vpack.c.bf16 %v436, %v433
  %v632 = vpack.c.bf16 %v444, %v441
  %v633 = vpack.c.bf16 %v452, %v449
  %v634 = vpack.c.bf16 %v460, %v457
  %v635 = vpack.c.bf16 %v468, %v465
  %v636 = vpack.c.bf16 %v476, %v473
  %v637 = vpack.c.bf16 %v484, %v481
  %v638 = vpack.c.bf16 %v492, %v489
  %v639 = vpack.c.bf16 %v500, %v497
  %v640 = vpack.c.bf16 %v508, %v505
  %v641 = vpack.c.bf16 %v516, %v513
  %v642 = vpack.c.bf16 %v524, %v521
  %v643 = vpack.c.bf16 %v532, %v529
  %v644 = vpack.c.bf16 %v540, %v537
  %v645 = vpack.c.bf16 %v548, %v545
  %v646 = vpack.c.bf16 %v556, %v553
  %v647 = vpack.c.bf16 %v564, %v561
  %v648 = vpack.c.bf16 %v572, %v569
  %v649 = vpack.c.bf16 %v580, %v577
  %v650 = vpack.c.bf16 %v588, %v585
  %v651 = vpack.c.bf16 %v596, %v593
  %v652 = vpack.c.bf16 %v604, %v601
  %v653 = vpack.c.bf16 %v612, %v609
  %v654 = vpack.c.bf16 %v620, %v617
  %v687 = vunpack.c.l.b16 %v623
  %v688 = vunpack.c.h.b16 %v623
  %v689 = vunpack.c.l.b16 %v624
  %v690 = vunpack.c.h.b16 %v624
  %v691 = vunpack.c.l.b16 %v625
  %v692 = vunpack.c.h.b16 %v625
  %v693 = vunpack.c.l.b16 %v626
  %v694 = vunpack.c.h.b16 %v626
  %v695 = vunpack.c.l.b16 %v627
  %v696 = vunpack.c.h.b16 %v627
  %v697 = vunpack.c.l.b16 %v628
  %v698 = vunpack.c.h.b16 %v628
  %v699 = vunpack.c.l.b16 %v629
  %v700 = vunpack.c.h.b16 %v629
  %v701 = vunpack.c.l.b16 %v630
  %v702 = vunpack.c.h.b16 %v630
  %v703 = vunpack.c.l.b16 %v631
  %v704 = vunpack.c.h.b16 %v631
  %v705 = vunpack.c.l.b16 %v632
  %v706 = vunpack.c.h.b16 %v632
  %v707 = vunpack.c.l.b16 %v633
  %v708 = vunpack.c.h.b16 %v633
  %v709 = vunpack.c.l.b16 %v634
  %v710 = vunpack.c.h.b16 %v634
  %v711 = vunpack.c.l.b16 %v635
  %v712 = vunpack.c.h.b16 %v635
  %v713 = vunpack.c.l.b16 %v636
  %v714 = vunpack.c.h.b16 %v636
  %v715 = vunpack.c.l.b16 %v637
  %v716 = vunpack.c.h.b16 %v637
  %v717 = vunpack.c.l.b16 %v638
  %v718 = vunpack.c.h.b16 %v638
  %v719 = vunpack.c.l.b16 %v639
  %v720 = vunpack.c.h.b16 %v639
  %v721 = vunpack.c.l.b16 %v640
  %v722 = vunpack.c.h.b16 %v640
  %v723 = vunpack.c.l.b16 %v641
  %v724 = vunpack.c.h.b16 %v641
  %v725 = vunpack.c.l.b16 %v642
  %v726 = vunpack.c.h.b16 %v642
  %v727 = vunpack.c.l.b16 %v643
  %v728 = vunpack.c.h.b16 %v643
  %v729 = vunpack.c.l.b16 %v644
  %v730 = vunpack.c.h.b16 %v644
  %v731 = vunpack.c.l.b16 %v645
  %v732 = vunpack.c.h.b16 %v645
  %v733 = vunpack.c.l.b16 %v646
  %v734 = vunpack.c.h.b16 %v646
  %v735 = vunpack.c.l.b16 %v647
  %v736 = vunpack.c.h.b16 %v647
  %v737 = vunpack.c.l.b16 %v648
  %v738 = vunpack.c.h.b16 %v648
  %v739 = vunpack.c.l.b16 %v649
  %v740 = vunpack.c.h.b16 %v649
  %v741 = vunpack.c.l.b16 %v650
  %v742 = vunpack.c.h.b16 %v650
  %v743 = vunpack.c.l.b16 %v651
  %v744 = vunpack.c.h.b16 %v651
  %v745 = vunpack.c.l.b16 %v652
  %v746 = vunpack.c.h.b16 %v652
  %v747 = vunpack.c.l.b16 %v653
  %v748 = vunpack.c.h.b16 %v653
  %v749 = vunpack.c.l.b16 %v654
  %v750 = vunpack.c.h.b16 %v654
  %v751 = vpack.c.b16 %v687, %v687
  %v752 = vpack.c.b16 %v688, %v688
  %v753 = vpack.c.b16 %v689, %v689
  %v754 = vpack.c.b16 %v690, %v690
  %v755 = vpack.c.b16 %v691, %v691
  %v756 = vpack.c.b16 %v692, %v692
  %v757 = vpack.c.b16 %v693, %v693
  %v758 = vpack.c.b16 %v694, %v694
  %v759 = vpack.c.b16 %v695, %v695
  %v760 = vpack.c.b16 %v696, %v696
  %v761 = vpack.c.b16 %v697, %v697
  %v762 = vpack.c.b16 %v698, %v698
  %v763 = vpack.c.b16 %v699, %v699
  %v764 = vpack.c.b16 %v700, %v700
  %v765 = vpack.c.b16 %v701, %v701
  %v766 = vpack.c.b16 %v702, %v702
  %v767 = vpack.c.b16 %v703, %v703
  %v768 = vpack.c.b16 %v704, %v704
  %v769 = vpack.c.b16 %v705, %v705
  %v770 = vpack.c.b16 %v706, %v706
  %v771 = vpack.c.b16 %v707, %v707
  %v772 = vpack.c.b16 %v708, %v708
  %v773 = vpack.c.b16 %v709, %v709
  %v774 = vpack.c.b16 %v710, %v710
  %v775 = vpack.c.b16 %v711, %v711
  %v776 = vpack.c.b16 %v712, %v712
  %v777 = vpack.c.b16 %v713, %v713
  %v778 = vpack.c.b16 %v714, %v714
  %v779 = vpack.c.b16 %v715, %v715
  %v780 = vpack.c.b16 %v716, %v716
  %v781 = vpack.c.b16 %v717, %v717
  %v782 = vpack.c.b16 %v718, %v718
  %v783 = vpack.c.b16 %v719, %v719
  %v784 = vpack.c.b16 %v720, %v720
  %v785 = vpack.c.b16 %v721, %v721
  %v786 = vpack.c.b16 %v722, %v722
  %v787 = vpack.c.b16 %v723, %v723
  %v788 = vpack.c.b16 %v724, %v724
  %v789 = vpack.c.b16 %v725, %v725
  %v790 = vpack.c.b16 %v726, %v726
  %v791 = vpack.c.b16 %v727, %v727
  %v792 = vpack.c.b16 %v728, %v728
  %v793 = vpack.c.b16 %v729, %v729
  %v794 = vpack.c.b16 %v730, %v730
  %v795 = vpack.c.b16 %v731, %v731
  %v796 = vpack.c.b16 %v732, %v732
  %v797 = vpack.c.b16 %v733, %v733
  %v798 = vpack.c.b16 %v734, %v734
  %v799 = vpack.c.b16 %v735, %v735
  %v800 = vpack.c.b16 %v736, %v736
  %v801 = vpack.c.b16 %v737, %v737
  %v802 = vpack.c.b16 %v738, %v738
  %v803 = vpack.c.b16 %v739, %v739
  %v804 = vpack.c.b16 %v740, %v740
  %v805 = vpack.c.b16 %v741, %v741
  %v806 = vpack.c.b16 %v742, %v742
  %v807 = vpack.c.b16 %v743, %v743
  %v808 = vpack.c.b16 %v744, %v744
  %v809 = vpack.c.b16 %v745, %v745
  %v810 = vpack.c.b16 %v746, %v746
  %v811 = vpack.c.b16 %v747, %v747
  %v812 = vpack.c.b16 %v748, %v748
  %v813 = vpack.c.b16 %v749, %v749
  %v814 = vpack.c.b16 %v750, %v750
  %879 = vst [vmem:[%s2] sm:$0xf] %v751
  %880 = vst [vmem:[%s2 + $0x4] sm:$0xf] %v752
  %881 = vst [vmem:[%s2 + $0x8] sm:$0xf] %v753
  %882 = vst [vmem:[%s2 + $0xc] sm:$0xf] %v754
  %883 = vst [vmem:[%s2 + $0x10] sm:$0xf] %v755
  %884 = vst [vmem:[%s2 + $0x14] sm:$0xf] %v756
  %885 = vst [vmem:[%s2 + $0x18] sm:$0xf] %v757
  %886 = vst [vmem:[%s2 + $0x1c] sm:$0xf] %v758
  %887 = vst [vmem:[%s2 + $0x20] sm:$0xf] %v759
  %888 = vst [vmem:[%s2 + $0x24] sm:$0xf] %v760
  %889 = vst [vmem:[%s2 + $0x28] sm:$0xf] %v761
  %890 = vst [vmem:[%s2 + $0x2c] sm:$0xf] %v762
  %891 = vst [vmem:[%s2 + $0x30] sm:$0xf] %v763
  %892 = vst [vmem:[%s2 + $0x34] sm:$0xf] %v764
  %893 = vst [vmem:[%s2 + $0x38] sm:$0xf] %v765
  %894 = vst [vmem:[%s2 + $0x3c] sm:$0xf] %v766
  %895 = vst [vmem:[%s2 + $0x40] sm:$0xf] %v767
  %896 = vst [vmem:[%s2 + $0x44] sm:$0xf] %v768
  %897 = vst [vmem:[%s2 + $0x48] sm:$0xf] %v769
  %898 = vst [vmem:[%s2 + $0x4c] sm:$0xf] %v770
  %899 = vst [vmem:[%s2 + $0x50] sm:$0xf] %v771
  %900 = vst [vmem:[%s2 + $0x54] sm:$0xf] %v772
  %901 = vst [vmem:[%s2 + $0x58] sm:$0xf] %v773
  %902 = vst [vmem:[%s2 + $0x5c] sm:$0xf] %v774
  %903 = vst [vmem:[%s2 + $0x60] sm:$0xf] %v775
  %904 = vst [vmem:[%s2 + $0x64] sm:$0xf] %v776
  %905 = vst [vmem:[%s2 + $0x68] sm:$0xf] %v777
  %906 = vst [vmem:[%s2 + $0x6c] sm:$0xf] %v778
  %907 = vst [vmem:[%s2 + $0x70] sm:$0xf] %v779
  %908 = vst [vmem:[%s2 + $0x74] sm:$0xf] %v780
  %909 = vst [vmem:[%s2 + $0x78] sm:$0xf] %v781
  %910 = vst [vmem:[%s2 + $0x7c] sm:$0xf] %v782
  %911 = vst [vmem:[%s2 + $0x80] sm:$0xf] %v783
  %912 = vst [vmem:[%s2 + $0x84] sm:$0xf] %v784
  %913 = vst [vmem:[%s2 + $0x88] sm:$0xf] %v785
  %914 = vst [vmem:[%s2 + $0x8c] sm:$0xf] %v786
  %915 = vst [vmem:[%s2 + $0x90] sm:$0xf] %v787
  %916 = vst [vmem:[%s2 + $0x94] sm:$0xf] %v788
  %917 = vst [vmem:[%s2 + $0x98] sm:$0xf] %v789
  %918 = vst [vmem:[%s2 + $0x9c] sm:$0xf] %v790
  %919 = vst [vmem:[%s2 + $0xa0] sm:$0xf] %v791
  %920 = vst [vmem:[%s2 + $0xa4] sm:$0xf] %v792
  %921 = vst [vmem:[%s2 + $0xa8] sm:$0xf] %v793
  %922 = vst [vmem:[%s2 + $0xac] sm:$0xf] %v794
  %923 = vst [vmem:[%s2 + $0xb0] sm:$0xf] %v795
  %924 = vst [vmem:[%s2 + $0xb4] sm:$0xf] %v796
  %925 = vst [vmem:[%s2 + $0xb8] sm:$0xf] %v797
  %926 = vst [vmem:[%s2 + $0xbc] sm:$0xf] %v798
  %927 = vst [vmem:[%s2 + $0xc0] sm:$0xf] %v799
  %928 = vst [vmem:[%s2 + $0xc4] sm:$0xf] %v800
  %929 = vst [vmem:[%s2 + $0xc8] sm:$0xf] %v801
  %930 = vst [vmem:[%s2 + $0xcc] sm:$0xf] %v802
  %931 = vst [vmem:[%s2 + $0xd0] sm:$0xf] %v803
  %932 = vst [vmem:[%s2 + $0xd4] sm:$0xf] %v804
  %933 = vst [vmem:[%s2 + $0xd8] sm:$0xf] %v805
  %934 = vst [vmem:[%s2 + $0xdc] sm:$0xf] %v806
  %935 = vst [vmem:[%s2 + $0xe0] sm:$0xf] %v807
  %936 = vst [vmem:[%s2 + $0xe4] sm:$0xf] %v808
  %937 = vst [vmem:[%s2 + $0xe8] sm:$0xf] %v809
  %938 = vst [vmem:[%s2 + $0xec] sm:$0xf] %v810
  %939 = vst [vmem:[%s2 + $0xf0] sm:$0xf] %v811
  %940 = vst [vmem:[%s2 + $0xf4] sm:$0xf] %v812
  %941 = vst [vmem:[%s2 + $0xf8] sm:$0xf] %v813
  %942 = vst [vmem:[%s2 + $0xfc] sm:$0xf] %v814
  %v943 = vadd.f32 %v369, %v372
  %v944 = vadd.f32 %v943, %v377
  %v945 = vadd.f32 %v944, %v380
  %v946 = vadd.f32 %v945, %v385
  %v947 = vadd.f32 %v946, %v388
  %v948 = vadd.f32 %v947, %v393
  %v949 = vadd.f32 %v948, %v396
  %v950 = vadd.f32 %v949, %v401
  %v951 = vadd.f32 %v950, %v404
  %v952 = vadd.f32 %v951, %v409
  %v953 = vadd.f32 %v952, %v412
  %v954 = vadd.f32 %v953, %v417
  %v955 = vadd.f32 %v954, %v420
  %v956 = vadd.f32 %v955, %v425
  %v957 = vadd.f32 %v956, %v428
  %v958 = vadd.f32 %v957, %v433
  %v959 = vadd.f32 %v958, %v436
  %v960 = vadd.f32 %v959, %v441
  %v961 = vadd.f32 %v960, %v444
  %v962 = vadd.f32 %v961, %v449
  %v963 = vadd.f32 %v962, %v452
  %v964 = vadd.f32 %v963, %v457
  %v965 = vadd.f32 %v964, %v460
  %v966 = vadd.f32 %v965, %v465
  %v967 = vadd.f32 %v966, %v468
  %v968 = vadd.f32 %v967, %v473
  %v969 = vadd.f32 %v968, %v476
  %v970 = vadd.f32 %v969, %v481
  %v971 = vadd.f32 %v970, %v484
  %v972 = vadd.f32 %v971, %v489
  %v973 = vadd.f32 %v972, %v492
  %v974 = vadd.f32 %v973, %v497
  %v975 = vadd.f32 %v974, %v500
  %v976 = vadd.f32 %v975, %v505
  %v977 = vadd.f32 %v976, %v508
  %v978 = vadd.f32 %v977, %v513
  %v979 = vadd.f32 %v978, %v516
  %v980 = vadd.f32 %v979, %v521
  %v981 = vadd.f32 %v980, %v524
  %v982 = vadd.f32 %v981, %v529
  %v983 = vadd.f32 %v982, %v532
  %v984 = vadd.f32 %v983, %v537
  %v985 = vadd.f32 %v984, %v540
  %v986 = vadd.f32 %v985, %v545
  %v987 = vadd.f32 %v986, %v548
  %v988 = vadd.f32 %v987, %v553
  %v989 = vadd.f32 %v988, %v556
  %v990 = vadd.f32 %v989, %v561
  %v991 = vadd.f32 %v990, %v564
  %v992 = vadd.f32 %v991, %v569
  %v993 = vadd.f32 %v992, %v572
  %v994 = vadd.f32 %v993, %v577
  %v995 = vadd.f32 %v994, %v580
  %v996 = vadd.f32 %v995, %v585
  %v997 = vadd.f32 %v996, %v588
  %v998 = vadd.f32 %v997, %v593
  %v999 = vadd.f32 %v998, %v596
  %v1000 = vadd.f32 %v999, %v601
  %v1001 = vadd.f32 %v1000, %v604
  %v1002 = vadd.f32 %v1001, %v609
  %v1003 = vadd.f32 %v1002, %v612
  %v1004 = vadd.f32 %v1003, %v617
  %v1005 = vadd.f32 %v1004, %v620
  %v1006 = vrot.slane %v1005, 4
  %v1007 = vadd.f32 %v1005, %v1006
  %v1008 = vrot.slane %v1007, 2
  %v1009 = vadd.f32 %v1007, %v1008
  %v1010 = vrot.slane %v1009, 1
  %v1011 = vadd.f32 %v1009, %v1010
  %v1012 = vmul.f32 %v369, %v369
  %v1013 = vmul.f32 %v372, %v372
  %v1014 = vmul.f32 %v377, %v377
  %v1015 = vmul.f32 %v380, %v380
  %v1016 = vmul.f32 %v385, %v385
  %v1017 = vmul.f32 %v388, %v388
  %v1018 = vmul.f32 %v393, %v393
  %v1019 = vmul.f32 %v396, %v396
  %v1020 = vmul.f32 %v401, %v401
  %v1021 = vmul.f32 %v404, %v404
  %v1022 = vmul.f32 %v409, %v409
  %v1023 = vmul.f32 %v412, %v412
  %v1024 = vmul.f32 %v417, %v417
  %v1025 = vmul.f32 %v420, %v420
  %v1026 = vmul.f32 %v425, %v425
  %v1027 = vmul.f32 %v428, %v428
  %v1028 = vmul.f32 %v433, %v433
  %v1029 = vmul.f32 %v436, %v436
  %v1030 = vmul.f32 %v441, %v441
  %v1031 = vmul.f32 %v444, %v444
  %v1032 = vmul.f32 %v449, %v449
  %v1033 = vmul.f32 %v452, %v452
  %v1034 = vmul.f32 %v457, %v457
  %v1035 = vmul.f32 %v460, %v460
  %v1036 = vmul.f32 %v465, %v465
  %v1037 = vmul.f32 %v468, %v468
  %v1038 = vmul.f32 %v473, %v473
  %v1039 = vmul.f32 %v476, %v476
  %v1040 = vmul.f32 %v481, %v481
  %v1041 = vmul.f32 %v484, %v484
  %v1042 = vmul.f32 %v489, %v489
  %v1043 = vmul.f32 %v492, %v492
  %v1044 = vmul.f32 %v497, %v497
  %v1045 = vmul.f32 %v500, %v500
  %v1046 = vmul.f32 %v505, %v505
  %v1047 = vmul.f32 %v508, %v508
  %v1048 = vmul.f32 %v513, %v513
  %v1049 = vmul.f32 %v516, %v516
  %v1050 = vmul.f32 %v521, %v521
  %v1051 = vmul.f32 %v524, %v524
  %v1052 = vmul.f32 %v529, %v529
  %v1053 = vmul.f32 %v532, %v532
  %v1054 = vmul.f32 %v537, %v537
  %v1055 = vmul.f32 %v540, %v540
  %v1056 = vmul.f32 %v545, %v545
  %v1057 = vmul.f32 %v548, %v548
  %v1058 = vmul.f32 %v553, %v553
  %v1059 = vmul.f32 %v556, %v556
  %v1060 = vmul.f32 %v561, %v561
  %v1061 = vmul.f32 %v564, %v564
  %v1062 = vmul.f32 %v569, %v569
  %v1063 = vmul.f32 %v572, %v572
  %v1064 = vmul.f32 %v577, %v577
  %v1065 = vmul.f32 %v580, %v580
  %v1066 = vmul.f32 %v585, %v585
  %v1067 = vmul.f32 %v588, %v588
  %v1068 = vmul.f32 %v593, %v593
  %v1069 = vmul.f32 %v596, %v596
  %v1070 = vmul.f32 %v601, %v601
  %v1071 = vmul.f32 %v604, %v604
  %v1072 = vmul.f32 %v609, %v609
  %v1073 = vmul.f32 %v612, %v612
  %v1074 = vmul.f32 %v617, %v617
  %v1075 = vmul.f32 %v620, %v620
  %v1076 = vadd.f32 %v1012, %v1013
  %v1077 = vadd.f32 %v1076, %v1014
  %v1078 = vadd.f32 %v1077, %v1015
  %v1079 = vadd.f32 %v1078, %v1016
  %v1080 = vadd.f32 %v1079, %v1017
  %v1081 = vadd.f32 %v1080, %v1018
  %v1082 = vadd.f32 %v1081, %v1019
  %v1083 = vadd.f32 %v1082, %v1020
  %v1084 = vadd.f32 %v1083, %v1021
  %v1085 = vadd.f32 %v1084, %v1022
  %v1086 = vadd.f32 %v1085, %v1023
  %v1087 = vadd.f32 %v1086, %v1024
  %v1088 = vadd.f32 %v1087, %v1025
  %v1089 = vadd.f32 %v1088, %v1026
  %v1090 = vadd.f32 %v1089, %v1027
  %v1091 = vadd.f32 %v1090, %v1028
  %v1092 = vadd.f32 %v1091, %v1029
  %v1093 = vadd.f32 %v1092, %v1030
  %v1094 = vadd.f32 %v1093, %v1031
  %v1095 = vadd.f32 %v1094, %v1032
  %v1096 = vadd.f32 %v1095, %v1033
  %v1097 = vadd.f32 %v1096, %v1034
  %v1098 = vadd.f32 %v1097, %v1035
  %v1099 = vadd.f32 %v1098, %v1036
  %v1100 = vadd.f32 %v1099, %v1037
  %v1101 = vadd.f32 %v1100, %v1038
  %v1102 = vadd.f32 %v1101, %v1039
  %v1103 = vadd.f32 %v1102, %v1040
  %v1104 = vadd.f32 %v1103, %v1041
  %v1105 = vadd.f32 %v1104, %v1042
  %v1106 = vadd.f32 %v1105, %v1043
  %v1107 = vadd.f32 %v1106, %v1044
  %v1108 = vadd.f32 %v1107, %v1045
  %v1109 = vadd.f32 %v1108, %v1046
  %v1110 = vadd.f32 %v1109, %v1047
  %v1111 = vadd.f32 %v1110, %v1048
  %v1112 = vadd.f32 %v1111, %v1049
  %v1113 = vadd.f32 %v1112, %v1050
  %v1114 = vadd.f32 %v1113, %v1051
  %v1115 = vadd.f32 %v1114, %v1052
  %v1116 = vadd.f32 %v1115, %v1053
  %v1117 = vadd.f32 %v1116, %v1054
  %v1118 = vadd.f32 %v1117, %v1055
  %v1119 = vadd.f32 %v1118, %v1056
  %v1120 = vadd.f32 %v1119, %v1057
  %v1121 = vadd.f32 %v1120, %v1058
  %v1122 = vadd.f32 %v1121, %v1059
  %v1123 = vadd.f32 %v1122, %v1060
  %v1124 = vadd.f32 %v1123, %v1061
  %v1125 = vadd.f32 %v1124, %v1062
  %v1126 = vadd.f32 %v1125, %v1063
  %v1127 = vadd.f32 %v1126, %v1064
  %v1128 = vadd.f32 %v1127, %v1065
  %v1129 = vadd.f32 %v1128, %v1066
  %v1130 = vadd.f32 %v1129, %v1067
  %v1131 = vadd.f32 %v1130, %v1068
  %v1132 = vadd.f32 %v1131, %v1069
  %v1133 = vadd.f32 %v1132, %v1070
  %v1134 = vadd.f32 %v1133, %v1071
  %v1135 = vadd.f32 %v1134, %v1072
  %v1136 = vadd.f32 %v1135, %v1073
  %v1137 = vadd.f32 %v1136, %v1074
  %v1138 = vadd.f32 %v1137, %v1075
  %v1139 = vrot.slane %v1138, 4
  %v1140 = vadd.f32 %v1138, %v1139
  %v1141 = vrot.slane %v1140, 2
  %v1142 = vadd.f32 %v1140, %v1141
  %v1143 = vrot.slane %v1142, 1
  %v1144 = vadd.f32 %v1142, %v1143
  %vm1145 = vcmask 1040384
  %v1146 = vsel %vm1145, %v1011, %v1144
  %vm1147 = vcmask 1041408
  %v1148 = vsel %vm1147, %v1146, 0.0
  %1149 = vst [vmem:[%s3] sm:$0xff] %v1148
  // Predicated region
  $region10: #{down_block_forward.7} parent=0 // pred_check
    _
  $region11: #{down_block_forward.7} parent=0 // pred_check_branch
    %1151 = sbr.rel (0) target = $region13
  $region12: #{down_block_forward.7} parent=0 // pred_region
    _
  $region13: #{down_block_forward.7} parent=0 // pred_fallthru
    _
  // Predicated region
  $region14: #{down_block_forward.7} parent=0 // pred_check
    _
  $region15: #{down_block_forward.7} parent=0 // pred_check_branch
    %1153 = sbr.rel (0) target = $region17
  $region16: #{down_block_forward.7} parent=0 // pred_region
    _
  $region17: #{down_block_forward.7} parent=0 // pred_fallthru
    _
  // Predicated region
  $region18: #{down_block_forward.7} parent=0 // pred_check
    _
  $region19: #{down_block_forward.7} parent=0 // pred_check_branch
    %1155 = sbr.rel (0) target = $region21
  $region20: #{down_block_forward.7} parent=0 // pred_region
    _
  $region21: #{down_block_forward.7} parent=0 // pred_fallthru
    _
  // Predicated region
  $region22: #{down_block_forward.7} parent=0 // pred_check
    _
  $region23: #{down_block_forward.7} parent=0 // pred_check_branch
    %1157 = sbr.rel (0) target = $region25
  $region24: #{down_block_forward.7} parent=0 // pred_region
    _
  $region25: #{down_block_forward.7} parent=0 // pred_fallthru
    _

</llo_original>
